<compile_context>
chip_gen: v7x
topology: tpu7x:2x2x1
jax: 0.10.0
libtpu: 0.0.40
codegen_flags: <defaults>
</compile_context>

<pallas_src>
import functools
import math

import jax
import jax.numpy as jnp
from jax import lax
from jax.experimental import pallas as pl
from jax.experimental.pallas import tpu as pltpu


# ------------------------------------------------------------------
# kernel 1: fused pairwise squared distance + top-K nearest neighbours
# ------------------------------------------------------------------
def _knn_kernel(xyz_ref, xyzt_ref, idx_ref, *, k):
    x = xyz_ref[0]                                                   # [TD, 3]
    xt = xyzt_ref[0]                                                 # [3, N]
    n = xt.shape[1]

    inner = jnp.dot(x, xt, preferred_element_type=jnp.float32)       # [TD, N]
    sq_q = jnp.sum(x * x, axis=-1, keepdims=True)                    # [TD, 1]
    sq_a = jnp.sum(xt * xt, axis=0, keepdims=True)                   # [1, N]
    d = sq_q + sq_a - 2.0 * inner                                    # [TD, N]

    # iterative top-K (min extraction); indices kept as exact f32 integers.
    # TODO(synk): for very large N, chunk the N axis with a running top-K
    # accumulator instead of holding the full [TD, N] row block.
    iota = lax.broadcasted_iota(jnp.int32, d.shape, 1).astype(jnp.float32)
    big = jnp.float32(n)
    cols = []
    for _ in range(k):
        m = jnp.min(d, axis=-1, keepdims=True)                       # [TD, 1]
        cand = jnp.where(d <= m, iota, big)
        sel = jnp.min(cand, axis=-1, keepdims=True)                  # [TD, 1]
        cols.append(sel)
        d = jnp.where(iota == sel, jnp.float32(jnp.inf), d)
    idx_ref[0] = jnp.concatenate(cols, axis=-1).astype(jnp.int32)    # [TD, K]


def knn_pallas(xyz, k, *, td=128):
    """Fused distance + kNN selection: xyz [B, N, 3] -> indices [B, N, k]."""
    B, N, _ = xyz.shape
    td = min(td, N)
    assert N % td == 0, "TODO(synk): remainder tiles are not masked"
    xyzt = jnp.transpose(xyz, (0, 2, 1))                             # tiny [B, 3, N]
    return pl.pallas_call(
        functools.partial(_knn_kernel, k=k),
        out_shape=jax.ShapeDtypeStruct((B, N, k), jnp.int32),
        grid=(B, N // td),
        in_specs=[pl.BlockSpec((1, td, 3), lambda b, t: (b, t, 0)),
                  pl.BlockSpec((1, 3, N), lambda b, t: (b, 0, 0))],
        out_specs=pl.BlockSpec((1, td, k), lambda b, t: (b, t, 0)),
        compiler_params=pltpu.CompilerParams(
            dimension_semantics=("parallel", "parallel")),
    )(xyz, xyzt)


# ------------------------------------------------------------------
# kernel 2: folded fc1 -> q/k/v + fc_delta.0 projection, packed lane-dense
# ------------------------------------------------------------------
def _proj_kernel(feat_ref, xyz_ref, wqkv_ref, bqkv_ref, wd1t_ref, packed_ref):
    qkv = jnp.dot(feat_ref[0], wqkv_ref[...],
                  preferred_element_type=jnp.float32) + bqkv_ref[...]    # [T, 3dm]
    p = jnp.dot(xyz_ref[0], wd1t_ref[...],
                preferred_element_type=jnp.float32)                      # [T, dm]
    packed_ref[0] = jnp.concatenate([qkv, p], axis=-1)                   # [T, 4dm]


# ------------------------------------------------------------------
# kernel 3: tiled vector attention (TQ queries per step)
# ------------------------------------------------------------------
def _attn_kernel(packed_q_ref, feat_ref, idxt_ref, gsrc_ref,
                 bd1_ref, wd2t_ref, bd2_ref,
                 wg1t_ref, bg1_ref, wg2t_ref, bg2_ref,
                 w2t_ref, b2_ref,
                 out_ref, attn_ref, *, gather_mode):
    dm = wd2t_ref.shape[0]
    TQ = packed_q_ref.shape[1]
    K = idxt_ref.shape[1]
    N = gsrc_ref.shape[1]

    packed_q = packed_q_ref[0]                 # [TQ, 4dm]  query tile of packed buffer
    q_q = packed_q[:, :dm]                     # [TQ, dm]
    p_q = packed_q[:, 3 * dm:4 * dm]           # [TQ, dm]   xyz @ Wd1^T (queries)
    pre = feat_ref[0]                          # [TQ, d_points] residual
    idx_t = idxt_ref[0]                        # [K, TQ]
    gsrc = gsrc_ref[0]                         # [N, 4dm]   packed [q | k | v | p]

    # --- gather neighbour rows from the VMEM-resident packed block ---
    if gather_mode == "take":
        g = jnp.take(gsrc, idx_t.reshape(K * TQ), axis=0)                # [K*TQ, 4dm]
    elif gather_mode == "take_along_axis":
        idx_b = jnp.broadcast_to(idx_t.reshape(K * TQ, 1),
                                 (K * TQ, gsrc.shape[1]))
        g = jnp.take_along_axis(gsrc, idx_b, axis=0)                     # [K*TQ, 4dm]
    else:  # "onehot": known-good MXU-matmul gather fallback
        iota_n = lax.broadcasted_iota(jnp.int32, (K, TQ, N), 2)
        onehot = (idx_t[:, :, None] == iota_n).astype(jnp.float32).reshape(K * TQ, N)
        g = jnp.dot(onehot, gsrc, preferred_element_type=jnp.float32)

    knn_k = g[:, dm:2 * dm]
    knn_v = g[:, 2 * dm:3 * dm]
    knn_p = g[:, 3 * dm:4 * dm]

    # replicate per-query rows across the K neighbour row-blocks (no concat copies)
    q_rep = jnp.broadcast_to(q_q[None], (K, TQ, dm)).reshape(K * TQ, dm)
    p_rep = jnp.broadcast_to(p_q[None], (K, TQ, dm)).reshape(K * TQ, dm)

    # fc_delta with fc_delta.0 folded:  relu((xyz_q - knn_xyz) @ Wd1^T + bd1)
    #                                == relu(p_q - knn_p + bd1)
    h = jnp.maximum(p_rep - knn_p + bd1_ref[...], 0.0)
    pos = jnp.dot(h, wd2t_ref[...],
                  preferred_element_type=jnp.float32) + bd2_ref[...]     # [K*TQ, dm]

    # fc_gamma (1/sqrt(dm) pre-folded into wg2t / bg2 host-side)
    gg = jnp.maximum(jnp.dot(q_rep - knn_k + pos, wg1t_ref[...],
                             preferred_element_type=jnp.float32) + bg1_ref[...], 0.0)
    logits = jnp.dot(gg, wg2t_ref[...],
                     preferred_element_type=jnp.float32) + bg2_ref[...]  # [K*TQ, dm]

    # softmax over the K neighbour row-blocks (dim=-2 of the reference),
    # normalized with a single reciprocal.
    lblk = [logits[kk * TQ:(kk + 1) * TQ, :] for kk in range(K)]
    m = lblk[0]
    for kk in range(1, K):
        m = jnp.maximum(m, lblk[kk])
    eblk = [jnp.exp(lb - m) for lb in lblk]
    s = eblk[0]
    for kk in range(1, K):
        s = s + eblk[kk]
    inv_s = pl.reciprocal(s, approx=False)
    ablk = [eb * inv_s for eb in eblk]                                   # K x [TQ, dm]

    # einsum('bmnf,bmnf->bmf', attn, v + pos_enc) for this query tile
    vp = knn_v + pos
    res = ablk[0] * vp[0:TQ, :]
    for kk in range(1, K):
        res = res + ablk[kk] * vp[kk * TQ:(kk + 1) * TQ, :]              # [TQ, dm]

    out_ref[0] = (jnp.dot(res, w2t_ref[...],
                          preferred_element_type=jnp.float32)
                  + b2_ref[...] + pre)                                   # [TQ, d_points]
    attn_ref[0] = jnp.concatenate(ablk, axis=-1)                         # [TQ, K*dm]


def _build_attention(mode, buffered, *, B, N, K, dm, d_points, tq):
    def wmap(b, t):
        return (0, 0)

    def wspec(shape):
        if buffered:
            return pl.BlockSpec(shape, wmap, pipeline_mode=pl.Buffered(1))
        return pl.BlockSpec(shape, wmap)

    if buffered:
        gsrc_spec = pl.BlockSpec((1, N, 4 * dm), lambda b, t: (b, 0, 0),
                                 pipeline_mode=pl.Buffered(1))
    else:
        gsrc_spec = pl.BlockSpec((1, N, 4 * dm), lambda b, t: (b, 0, 0))

    return pl.pallas_call(
        functools.partial(_attn_kernel, gather_mode=mode),
        out_shape=(jax.ShapeDtypeStruct((B, N, d_points), jnp.float32),
                   jax.ShapeDtypeStruct((B, N, K * dm), jnp.float32)),
        grid=(B, N // tq),
        in_specs=[
            pl.BlockSpec((1, tq, 4 * dm), lambda b, t: (b, t, 0)),   # packed (query tile)
            pl.BlockSpec((1, tq, d_points), lambda b, t: (b, t, 0)), # features (residual)
            pl.BlockSpec((1, K, tq), lambda b, t: (b, 0, t)),        # knn idx (transposed)
            gsrc_spec,                                               # packed, full N (gather src)
            wspec((1, dm)),          # fc_delta.0 b
            wspec((dm, dm)),         # fc_delta.2 W^T
            wspec((1, dm)),          # fc_delta.2 b
            wspec((dm, dm)),         # fc_gamma.0 W^T
            wspec((1, dm)),          # fc_gamma.0 b
            wspec((dm, dm)),         # fc_gamma.2 W^T (pre-scaled by 1/sqrt(dm))
            wspec((1, dm)),          # fc_gamma.2 b  (pre-scaled)
            wspec((dm, d_points)),   # fc2 W^T
            wspec((1, d_points)),    # fc2 b
        ],
        out_specs=(pl.BlockSpec((1, tq, d_points), lambda b, t: (b, t, 0)),
                   pl.BlockSpec((1, tq, K * dm), lambda b, t: (b, t, 0))),
        compiler_params=pltpu.CompilerParams(
            dimension_semantics=("parallel", "parallel"),
            vmem_limit_bytes=32 * 1024 * 1024),
    )


# ------------------------------------------------------------------
# host-side parameter preparation (one-time folds; no extra runtime cost)
# ------------------------------------------------------------------
def _prep_params(p):
    dm = p['w1'].shape[0]
    wqkv_t = jnp.concatenate([p['wq'].T, p['wk'].T, p['wv'].T], axis=1)  # [dm, 3dm]
    w_qkv_f = p['w1'].T @ wqkv_t                                         # fc1 folded in
    b_qkv_f = (p['b1'] @ wqkv_t)[None, :]
    scale = 1.0 / math.sqrt(dm)
    return dict(
        w_qkv_f=w_qkv_f, b_qkv_f=b_qkv_f,
        wd1t=p['wd1'].T, bd1=p['bd1'][None, :],
        wd2t=p['wd2'].T, bd2=p['bd2'][None, :],
        wg1t=p['wg1'].T, bg1=p['bg1'][None, :],
        wg2t=p['wg2'].T * scale, bg2=p['bg2'][None, :] * scale,
        w2t=p['w2'].T, b2=p['b2'][None, :],
    )


def transformer_block_pallas(xyz, feats, params, k, *, tq=128, tproj=512):
    """Full TransformerBlock forward: (xyz, features) -> (res, attn)."""
    B, N, _ = xyz.shape
    d_points = feats.shape[-1]
    dm = params['w1'].shape[0]
    K = k

    tproj = min(tproj, N)
    tq = min(tq, N)
    assert N % tproj == 0 and N % tq == 0, \
        "TODO(synk): remainder tiles are not masked"

    # kernel 1: fused distances + kNN (no [B,N,N] HBM materialization)
    knn_idx = knn_pallas(xyz, K)
    knn_idx_t = jnp.transpose(knn_idx, (0, 2, 1))                    # tiny [B, K, N]

    pp = _prep_params(params)

    # kernel 2: packed, lane-dense [q | k | v | xyz@Wd1^T] buffer (width 4*dm)
    packed = pl.pallas_call(
        _proj_kernel,
        out_shape=jax.ShapeDtypeStruct((B, N, 4 * dm), jnp.float32),
        grid=(B, N // tproj),
        in_specs=[
            pl.BlockSpec((1, tproj, d_points), lambda b, t: (b, t, 0)),
            pl.BlockSpec((1, tproj, 3), lambda b, t: (b, t, 0)),
            pl.BlockSpec((d_points, 3 * dm), lambda b, t: (0, 0)),
            pl.BlockSpec((1, 3 * dm), lambda b, t: (0, 0)),
            pl.BlockSpec((3, dm), lambda b, t: (0, 0)),
        ],
        out_specs=pl.BlockSpec((1, tproj, 4 * dm), lambda b, t: (b, t, 0)),
        compiler_params=pltpu.CompilerParams(
            dimension_semantics=("parallel", "parallel")),
    )(feats, xyz, pp['w_qkv_f'], pp['b_qkv_f'], pp['wd1t'])

    weight_args = (pp['bd1'], pp['wd2t'], pp['bd2'],
                   pp['wg1t'], pp['bg1'], pp['wg2t'], pp['bg2'],
                   pp['w2t'], pp['b2'])

    # kernel 3: attention.  Prefer the direct VMEM row gather; fall back to a
    # one-hot-matmul gather on jax builds without the in-kernel gather lowering.
    attempts = (("take", True), ("take_along_axis", True),
                ("take", False), ("onehot", False))
    last_err = None
    for mode, buffered in attempts:
        try:
            call = _build_attention(mode, buffered, B=B, N=N, K=K, dm=dm,
                                    d_points=d_points, tq=tq)
            out, attn_packed = call(packed, feats, knn_idx_t, packed, *weight_args)
            out = jax.block_until_ready(out)
            attn_packed = jax.block_until_ready(attn_packed)
            break
        except Exception as e:  # lowering support differs across jax versions
            last_err = e
    else:
        raise last_err

    attn = attn_packed.reshape(B, N, K, dm)
    return out, attn


# ------------------------------------------------------------------
# pure-JAX reference (for verification)
# ------------------------------------------------------------------
def _linear(x, w, b=None):
    y = x @ w.T
    return y + b if b is not None else y


def reference(xyz, feats, knn_idx, p):
    dm = p['w1'].shape[0]
    x = _linear(feats, p['w1'], p['b1'])
    q = _linear(x, p['wq'])
    kk = _linear(x, p['wk'])
    vv = _linear(x, p['wv'])
    gather = jax.vmap(lambda arr, idx: arr[idx])
    knn_xyz = gather(xyz, knn_idx)
    knn_k = gather(kk, knn_idx)
    knn_v = gather(vv, knn_idx)
    rel = xyz[:, :, None, :] - knn_xyz
    pos_enc = _linear(jnp.maximum(_linear(rel, p['wd1'], p['bd1']), 0.0),
                      p['wd2'], p['bd2'])
    attn_in = q[:, :, None, :] - knn_k + pos_enc
    g = _linear(jnp.maximum(_linear(attn_in, p['wg1'], p['bg1']), 0.0),
                p['wg2'], p['bg2'])
    attn = jax.nn.softmax(g / math.sqrt(dm), axis=-2)
    res = jnp.sum(attn * (knn_v + pos_enc), axis=2)
    out = _linear(res, p['w2'], p['b2']) + feats
    return out, attn


if __name__ == "__main__":
    B, N, d_points, d_model, K = 2, 256, 8, 32, 4

    key = jax.random.PRNGKey(0)
    k_iter = iter(jax.random.split(key, 32))

    def nrm(shape, scale=0.2):
        return jax.random.normal(next(k_iter), shape, jnp.float32) * scale

    xyz = nrm((B, N, 3), 1.0)
    feats = nrm((B, N, d_points), 1.0)
    params = dict(
        w1=nrm((d_model, d_points)), b1=nrm((d_model,)),
        w2=nrm((d_points, d_model)), b2=nrm((d_points,)),
        wd1=nrm((d_model, 3)), bd1=nrm((d_model,)),
        wd2=nrm((d_model, d_model)), bd2=nrm((d_model,)),
        wg1=nrm((d_model, d_model)), bg1=nrm((d_model,)),
        wg2=nrm((d_model, d_model)), bg2=nrm((d_model,)),
        wq=nrm((d_model, d_model)), wk=nrm((d_model, d_model)),
        wv=nrm((d_model, d_model)),
    )

    # --- kNN check: distances at the selected indices must equal the exact
    # K smallest distances (robust to fp tie-ordering differences).
    knn_idx = jax.block_until_ready(knn_pallas(xyz, K))
    assert knn_idx.shape == (B, N, K) and knn_idx.dtype == jnp.int32
    ref_d = jnp.sum((xyz[:, :, None] - xyz[:, None]) ** 2, axis=-1)
    ref_topk = -jax.lax.top_k(-ref_d, K)[0]                      # K smallest, ascending
    got_d = jnp.take_along_axis(ref_d, knn_idx, axis=-1)
    assert jnp.allclose(got_d, ref_topk, atol=1e-3, rtol=1e-3), \
        float(jnp.max(jnp.abs(got_d - ref_topk)))

    # --- full block ---
    out, attn = transformer_block_pallas(xyz, feats, params, K)
    out = jax.block_until_ready(out)
    attn = jax.block_until_ready(attn)

    ref_out, ref_attn = reference(xyz, feats, knn_idx, params)
    assert out.shape == (B, N, d_points) and attn.shape == (B, N, K, d_model)
    assert jnp.allclose(out, ref_out, atol=1e-4, rtol=1e-4), \
        float(jnp.max(jnp.abs(out - ref_out)))
    assert jnp.allclose(attn, ref_attn, atol=1e-4, rtol=1e-4), \
        float(jnp.max(jnp.abs(attn - ref_attn)))

    print("KERNEL_OK")
</pallas_src>

<mosaic_0001>
module attributes {stable_mosaic.version = 11 : i64} {
  func.func @_knn_kernel(%arg0: i32, %arg1: i32, %arg2: memref<1x128x3xf32, #tpu.memory_space<vmem>>, %arg3: memref<1x3x256xf32, #tpu.memory_space<vmem>>, %arg4: memref<1x128x4xi32, #tpu.memory_space<vmem>>) attributes {dimension_semantics = [#tpu.dimension_semantics<parallel>, #tpu.dimension_semantics<parallel>], iteration_bounds = array<i64: 2, 2>, scalar_prefetch = 0 : i64, scratch_operands = 0 : i64, tpu.core_type = #tpu.core_type<tc>, window_params = [{transform_indices = @transform_0, window_bounds = array<i64: 1, 128, 3>}, {transform_indices = @transform_1, window_bounds = array<i64: 1, 3, 256>}, {transform_indices = @transform_2, window_bounds = array<i64: 1, 128, 4>}]} {
    %c0 = arith.constant 0 : index
    %c0_0 = arith.constant 0 : index
    %c0_1 = arith.constant 0 : index
    %0 = vector.load %arg2[%c0, %c0_0, %c0_1] : memref<1x128x3xf32, #tpu.memory_space<vmem>>, vector<1x128x3xf32>
    %1 = vector.shape_cast %0 : vector<1x128x3xf32> to vector<128x3xf32>
    %c0_2 = arith.constant 0 : index
    %c0_3 = arith.constant 0 : index
    %c0_4 = arith.constant 0 : index
    %2 = vector.load %arg3[%c0_2, %c0_3, %c0_4] : memref<1x3x256xf32, #tpu.memory_space<vmem>>, vector<1x3x256xf32>
    %3 = vector.shape_cast %2 : vector<1x3x256xf32> to vector<3x256xf32>
    %cst = arith.constant dense<0.000000e+00> : vector<128x256xf32>
    %4 = tpu.matmul %1, %3, %cst {dimension_numbers = #tpu.dot_dimension_numbers<[1], [0], [0], [1], [0, 0, 1, 1], [], []>} : vector<128x3xf32>, vector<3x256xf32>, vector<128x256xf32> -> vector<128x256xf32>
    %5 = arith.mulf %1, %1 : vector<128x3xf32>
    %cst_5 = arith.constant dense<0.000000e+00> : vector<128xf32>
    %6 = vector.multi_reduction <add>, %5, %cst_5 [1] : vector<128x3xf32> to vector<128xf32>
    %7 = vector.shape_cast %6 : vector<128xf32> to vector<128x1xf32>
    %8 = arith.mulf %3, %3 : vector<3x256xf32>
    %cst_6 = arith.constant dense<0.000000e+00> : vector<256xf32>
    %9 = vector.multi_reduction <add>, %8, %cst_6 [0] : vector<3x256xf32> to vector<256xf32>
    %10 = vector.shape_cast %9 : vector<256xf32> to vector<1x256xf32>
    %11 = vector.broadcast %7 : vector<128x1xf32> to vector<128x256xf32>
    %12 = vector.broadcast %10 : vector<1x256xf32> to vector<128x256xf32>
    %13 = arith.addf %11, %12 : vector<128x256xf32>
    %cst_7 = arith.constant 2.000000e+00 : f32
    %14 = vector.broadcast %cst_7 : f32 to vector<128x256xf32>
    %15 = arith.mulf %14, %4 : vector<128x256xf32>
    %16 = arith.subf %13, %15 : vector<128x256xf32>
    %17 = tpu.iota {dimensions = array<i32: 1>} : vector<128x256xi32>
    %18 = arith.sitofp %17 : vector<128x256xi32> to vector<128x256xf32>
    %cst_8 = arith.constant dense<0x7F800000> : vector<128xf32>
    %19 = vector.multi_reduction <minimumf>, %16, %cst_8 [1] : vector<128x256xf32> to vector<128xf32>
    %20 = vector.shape_cast %19 : vector<128xf32> to vector<128x1xf32>
    %21 = vector.broadcast %20 : vector<128x1xf32> to vector<128x256xf32>
    %22 = arith.cmpf ole, %16, %21 : vector<128x256xf32>
    %cst_9 = arith.constant 2.560000e+02 : f32
    %23 = vector.broadcast %cst_9 : f32 to vector<128x256xf32>
    %24 = arith.select %22, %18, %23 : vector<128x256xi1>, vector<128x256xf32>
    %cst_10 = arith.constant dense<0x7F800000> : vector<128xf32>
    %25 = vector.multi_reduction <minimumf>, %24, %cst_10 [1] : vector<128x256xf32> to vector<128xf32>
    %26 = vector.shape_cast %25 : vector<128xf32> to vector<128x1xf32>
    %27 = vector.broadcast %26 : vector<128x1xf32> to vector<128x256xf32>
    %28 = arith.cmpf oeq, %18, %27 : vector<128x256xf32>
    %cst_11 = arith.constant 0x7F800000 : f32
    %29 = vector.broadcast %cst_11 : f32 to vector<128x256xf32>
    %30 = arith.select %28, %29, %16 : vector<128x256xi1>, vector<128x256xf32>
    %cst_12 = arith.constant dense<0x7F800000> : vector<128xf32>
    %31 = vector.multi_reduction <minimumf>, %30, %cst_12 [1] : vector<128x256xf32> to vector<128xf32>
    %32 = vector.shape_cast %31 : vector<128xf32> to vector<128x1xf32>
    %33 = vector.broadcast %32 : vector<128x1xf32> to vector<128x256xf32>
    %34 = arith.cmpf ole, %30, %33 : vector<128x256xf32>
    %cst_13 = arith.constant 2.560000e+02 : f32
    %35 = vector.broadcast %cst_13 : f32 to vector<128x256xf32>
    %36 = arith.select %34, %18, %35 : vector<128x256xi1>, vector<128x256xf32>
    %cst_14 = arith.constant dense<0x7F800000> : vector<128xf32>
    %37 = vector.multi_reduction <minimumf>, %36, %cst_14 [1] : vector<128x256xf32> to vector<128xf32>
    %38 = vector.shape_cast %37 : vector<128xf32> to vector<128x1xf32>
    %39 = vector.broadcast %38 : vector<128x1xf32> to vector<128x256xf32>
    %40 = arith.cmpf oeq, %18, %39 : vector<128x256xf32>
    %cst_15 = arith.constant 0x7F800000 : f32
    %41 = vector.broadcast %cst_15 : f32 to vector<128x256xf32>
    %42 = arith.select %40, %41, %30 : vector<128x256xi1>, vector<128x256xf32>
    %cst_16 = arith.constant dense<0x7F800000> : vector<128xf32>
    %43 = vector.multi_reduction <minimumf>, %42, %cst_16 [1] : vector<128x256xf32> to vector<128xf32>
    %44 = vector.shape_cast %43 : vector<128xf32> to vector<128x1xf32>
    %45 = vector.broadcast %44 : vector<128x1xf32> to vector<128x256xf32>
    %46 = arith.cmpf ole, %42, %45 : vector<128x256xf32>
    %cst_17 = arith.constant 2.560000e+02 : f32
    %47 = vector.broadcast %cst_17 : f32 to vector<128x256xf32>
    %48 = arith.select %46, %18, %47 : vector<128x256xi1>, vector<128x256xf32>
    %cst_18 = arith.constant dense<0x7F800000> : vector<128xf32>
    %49 = vector.multi_reduction <minimumf>, %48, %cst_18 [1] : vector<128x256xf32> to vector<128xf32>
    %50 = vector.shape_cast %49 : vector<128xf32> to vector<128x1xf32>
    %51 = vector.broadcast %50 : vector<128x1xf32> to vector<128x256xf32>
    %52 = arith.cmpf oeq, %18, %51 : vector<128x256xf32>
    %cst_19 = arith.constant 0x7F800000 : f32
    %53 = vector.broadcast %cst_19 : f32 to vector<128x256xf32>
    %54 = arith.select %52, %53, %42 : vector<128x256xi1>, vector<128x256xf32>
    %cst_20 = arith.constant dense<0x7F800000> : vector<128xf32>
    %55 = vector.multi_reduction <minimumf>, %54, %cst_20 [1] : vector<128x256xf32> to vector<128xf32>
    %56 = vector.shape_cast %55 : vector<128xf32> to vector<128x1xf32>
    %57 = vector.broadcast %56 : vector<128x1xf32> to vector<128x256xf32>
    %58 = arith.cmpf ole, %54, %57 : vector<128x256xf32>
    %cst_21 = arith.constant 2.560000e+02 : f32
    %59 = vector.broadcast %cst_21 : f32 to vector<128x256xf32>
    %60 = arith.select %58, %18, %59 : vector<128x256xi1>, vector<128x256xf32>
    %cst_22 = arith.constant dense<0x7F800000> : vector<128xf32>
    %61 = vector.multi_reduction <minimumf>, %60, %cst_22 [1] : vector<128x256xf32> to vector<128xf32>
    %62 = vector.shape_cast %61 : vector<128xf32> to vector<128x1xf32>
    %63 = tpu.concatenate %26, %38, %50, %62 in 1 : vector<128x1xf32>, vector<128x1xf32>, vector<128x1xf32>, vector<128x1xf32> -> vector<128x4xf32>
    %64 = arith.fptosi %63 : vector<128x4xf32> to vector<128x4xi32>
    %c0_23 = arith.constant 0 : index
    %c0_24 = arith.constant 0 : index
    %c0_25 = arith.constant 0 : index
    %65 = vector.load %arg4[%c0_23, %c0_24, %c0_25] : memref<1x128x4xi32, #tpu.memory_space<vmem>>, vector<1x128x4xi32>
    %66 = vector.shape_cast %65 : vector<1x128x4xi32> to vector<128x4xi32>
    %67 = vector.shape_cast %64 : vector<128x4xi32> to vector<1x128x4xi32>
    tpu.vector_store %arg4[%c0_23, %c0_24, %c0_25], %67 {strides = array<i32>} : memref<1x128x4xi32, #tpu.memory_space<vmem>>, vector<1x128x4xi32>,
    return
  }
  func.func @transform_0(%arg0: i32, %arg1: i32) -> (i32, i32, i32) {
    %c0_i32 = arith.constant 0 : i32
    %c0_i32_0 = arith.constant 0 : i32
    return %arg0, %arg1, %c0_i32 : i32, i32, i32
  }
  func.func @transform_1(%arg0: i32, %arg1: i32) -> (i32, i32, i32) {
    %c0_i32 = arith.constant 0 : i32
    %c0_i32_0 = arith.constant 0 : i32
    %c0_i32_1 = arith.constant 0 : i32
    return %arg0, %c0_i32, %c0_i32_0 : i32, i32, i32
  }
  func.func @transform_2(%arg0: i32, %arg1: i32) -> (i32, i32, i32) {
    %c0_i32 = arith.constant 0 : i32
    %c0_i32_0 = arith.constant 0 : i32
    return %arg0, %arg1, %c0_i32 : i32, i32, i32
  }
}

</mosaic_0001>

<llo_original>
// kernel: tpu_custom_call.1
$region0: #{tpu_custom_call.1}
  #allocation0 [shape = 'u32[]', space=smem, size = 0x4, offset = 0x4, fixed_abs, tag = 'smem constant byte address 0x4 - core index']
  #allocation1 [shape = 'u32[144,128]{1,0:T(1,128)}', space=vmem, size = 0x12000, scoped, tag = 'internal scratch']
  %s0 = inlined_call_operand.vmem [shape: f32[2,256,3], index: 0, kind: input, shape index: {}]
  %s1 = inlined_call_operand.vmem [shape: f32[2,3,256], index: 1, kind: input, shape index: {}]
  %s2 = inlined_call_operand.vmem [shape: s32[2,256,4], index: 2, kind: output, shape index: {}]
  %s3 = sld [smem:[#allocation0]]
  $region41: #{tpu_custom_call.1} parent=0
    _
  %s5 = ssub.s32 1, %s3
  %s6 = scalar_select 0, %s5, %s3
  loop: start=0, step=1, limit=6
  $region2: #{tpu_custom_call.1} parent=0 // loop_pre_header
    _
  $region3: #{tpu_custom_call.1} parent=0 // loop_header
    %s8 = sphi 0, %s12
    %p9 = scmp.ge.s32.totalorder %s8, 6
    %s15 = sphi 0, %s27
    %s16 = sphi 0, %s23
    %s17 = sphi 0, %s15
    %s18 = sphi 0, %s16
    %s19 = sphi 0, %s17
    %s20 = sphi 0, %s18
    %s32 = sphi 0, %s34
    %s35 = sphi 0, %s32
    %s36 = sphi 0, %s35
    %s52 = sphi 0, %s36
    %s58 = sphi 0, %s60
    %s61 = sphi 0, %s58
    %s62 = sphi 0, %s61
    %s78 = sphi 0, %s62
    %s86 = sphi 0, %s88
    %s89 = sphi 0, %s86
    %s90 = sphi 0, %s89
    %s106 = sphi 0, %s90
  $region4: #{tpu_custom_call.1} parent=0 // loop_header_branch
    %11 = sbr.rel (%p9) target = $region8
  $region5: #{tpu_custom_call.1} parent=0 // loop_body
    %s13 = ssub.s32 %s8, 1
    %s14 = ssub.s32 %s8, 2
    %s21 = sadd.s32 1, %s16
    %p22 = scmp.ge.s32.totalorder %s21, 2
    %s23 = scalar_select %p22, 0, %s21
    %s24 = sadd.s32 1, %s15
    %s25 = scalar_select %p22, %s24, %s15
    %p26 = scmp.ge.s32.totalorder %s25, 2
    %s27 = scalar_select %p26, 0, %s25
    %s28 = ssub.s32 %s15, %s27
    %s29 = ssub.s32 %s16, %s23
    %s30 = sor.u32 %s28, %s29
    %p31 = scmp.eq.s32.totalorder %s30, 0
    %s33 = sadd.s32 %s32, 1
    %s34 = scalar_select %p31, %s32, %s33
    %p37 = pneg %p31
    %p38 = scmp.eq.s32.totalorder %s8, 3
    %p39 = por %p37, %p38
    %p40 = scmp.ne.s32.totalorder %s32, %s35
    %p41 = scmp.eq.s32.totalorder %s8, 0
    %p42 = por %p40, %p41
    %p43 = scmp.ne.s32.totalorder %s32, %s35
    %p44 = scmp.eq.s32.totalorder %s13, 3
    %p45 = por %p43, %p44
    %p46 = scmp.ne.s32.totalorder %s35, %s36
    %p47 = scmp.eq.s32.totalorder %s13, 0
    %p48 = por %p46, %p47
    %p49 = scmp.ne.s32.totalorder %s35, %s36
    %p50 = scmp.eq.s32.totalorder %s14, 3
    %p51 = por %p49, %p50
    %p53 = scmp.ne.s32.totalorder %s36, %s52
    %p54 = scmp.eq.s32.totalorder %s14, 0
    %p55 = por %p53, %p54
    %s56 = ssub.s32 %s15, %s27
    %p57 = scmp.eq.s32.totalorder %s56, 0
    %s59 = sadd.s32 %s58, 1
    %s60 = scalar_select %p57, %s58, %s59
    %p63 = pneg %p57
    %p64 = scmp.eq.s32.totalorder %s8, 3
    %p65 = por %p63, %p64
    %p66 = scmp.ne.s32.totalorder %s58, %s61
    %p67 = scmp.eq.s32.totalorder %s8, 0
    %p68 = por %p66, %p67
    %p69 = scmp.ne.s32.totalorder %s58, %s61
    %p70 = scmp.eq.s32.totalorder %s13, 3
    %p71 = por %p69, %p70
    %p72 = scmp.ne.s32.totalorder %s61, %s62
    %p73 = scmp.eq.s32.totalorder %s13, 0
    %p74 = por %p72, %p73
    %p75 = scmp.ne.s32.totalorder %s61, %s62
    %p76 = scmp.eq.s32.totalorder %s14, 3
    %p77 = por %p75, %p76
    %p79 = scmp.ne.s32.totalorder %s62, %s78
    %p80 = scmp.eq.s32.totalorder %s14, 0
    %p81 = por %p79, %p80
    %s82 = ssub.s32 %s15, %s27
    %s83 = ssub.s32 %s16, %s23
    %s84 = sor.u32 %s82, %s83
    %p85 = scmp.eq.s32.totalorder %s84, 0
    %s87 = sadd.s32 %s86, 1
    %s88 = scalar_select %p85, %s86, %s87
    %p91 = pneg %p85
    %p92 = scmp.eq.s32.totalorder %s8, 3
    %p93 = por %p91, %p92
    %p94 = scmp.ne.s32.totalorder %s86, %s89
    %p95 = scmp.eq.s32.totalorder %s8, 0
    %p96 = por %p94, %p95
    %p97 = scmp.ne.s32.totalorder %s86, %s89
    %p98 = scmp.eq.s32.totalorder %s13, 3
    %p99 = por %p97, %p98
    %p100 = scmp.ne.s32.totalorder %s89, %s90
    %p101 = scmp.eq.s32.totalorder %s13, 0
    %p102 = por %p100, %p101
    %p103 = scmp.ne.s32.totalorder %s89, %s90
    %p104 = scmp.eq.s32.totalorder %s14, 3
    %p105 = por %p103, %p104
    %p107 = scmp.ne.s32.totalorder %s90, %s106
    %p108 = scmp.eq.s32.totalorder %s14, 0
    %p109 = por %p107, %p108
    %p110 = scmp.le.s32.totalorder 1, %s8
    %p111 = scmp.lt.s32.totalorder %s8, 5
    %p112 = pnand %p110, %p111
    %p113 = pneg %p112
    // Predicated region
    $region9: #{tpu_custom_call.1} parent=5 // pred_check
      _
    $region10: #{tpu_custom_call.1} parent=5 // pred_check_branch
      %115 = sbr.rel (%p112) target = $region12
    $region11: #{tpu_custom_call.1} parent=5 // pred_region
      %s116 = ssub.s32 %s8, 1
    $region12: #{tpu_custom_call.1} parent=5 // pred_fallthru
      _
    %p117 = scmp.lt.s32.totalorder %s8, 4
    // Predicated region
    $region13: #{tpu_custom_call.1} parent=5 // pred_check
      %p118 = pneg %p117
    $region14: #{tpu_custom_call.1} parent=5 // pred_check_branch
      %120 = sbr.rel (%p118) target = $region16
    $region15: #{tpu_custom_call.1} parent=5 // pred_region
      // Predicated region
      $region17: #{tpu_custom_call.1} parent=15 // pred_check
        %p121 = pneg %p42
      $region18: #{tpu_custom_call.1} parent=15 // pred_check_branch
        %123 = sbr.rel (%p121) target = $region20
      $region19: #{tpu_custom_call.1} parent=15 // pred_region
        %s124 = smul.u32 16, %s16
        %p125 = scmp.lt.s32.totalorder %s15, 1
        %s126 = scalar_select %p125, %s15, 1
        %p127 = scmp.lt.s32.totalorder %s124, 31
        %s128 = scalar_select %p127, %s124, 31
        %s129 = smul.addr %s126, 32
        %s130 = sadd.s32 %s128, %s129
        %s131 = smul.addr %s130, 8
        %s132 = scalar_lea.vmem %s0, %s131
        %s133 = smul.u32 16, %s16
      $region20: #{tpu_custom_call.1} parent=15 // pred_fallthru
        _
      // Predicated region
      $region21: #{tpu_custom_call.1} parent=15 // pred_check
        %p134 = pneg %p68
      $region22: #{tpu_custom_call.1} parent=15 // pred_check_branch
        %136 = sbr.rel (%p134) target = $region24
      $region23: #{tpu_custom_call.1} parent=15 // pred_region
        %p137 = scmp.lt.s32.totalorder %s15, 1
        %s138 = scalar_select %p137, %s15, 1
        %s139 = smul.addr %s138, 2
        %s140 = smul.addr %s139, 4
        %s141 = scalar_lea.vmem %s1, %s140
      $region24: #{tpu_custom_call.1} parent=15 // pred_fallthru
        _
    $region16: #{tpu_custom_call.1} parent=5 // pred_fallthru
      _
    %p142 = scmp.le.s32.totalorder 1, %s8
    %p143 = scmp.lt.s32.totalorder %s8, 5
    %p144 = pnand %p142, %p143
    %p145 = pneg %p144
    // Predicated region
    $region25: #{tpu_custom_call.1} parent=5 // pred_check
      _
    $region26: #{tpu_custom_call.1} parent=5 // pred_check_branch
      %147 = sbr.rel (%p144) target = $region28
    $region27: #{tpu_custom_call.1} parent=5 // pred_region
      %s148 = ssub.s32 %s8, 1
      %s149 = smul.u32 16, %s18
      %p150 = scmp.lt.s32.totalorder %s17, 1
      %s151 = scalar_select %p150, %s17, 1
      %p152 = scmp.lt.s32.totalorder %s149, 31
      %s153 = scalar_select %p152, %s149, 31
      %s154 = smul.addr %s151, 32
      %s155 = sadd.s32 %s153, %s154
      %s156 = smul.addr %s155, 8
      %s157 = scalar_lea.vmem %s0, %s156
      %p158 = pneg %p48
      %p159 = pneg %p45
      %p160 = scmp.lt.s32.totalorder %s17, 1
      %s161 = scalar_select %p160, %s17, 1
      %s162 = smul.addr %s161, 2
      %s163 = smul.addr %s162, 4
      %s164 = scalar_lea.vmem %s1, %s163
      %p165 = pneg %p74
      %p166 = pneg %p71
      %p167 = pneg %p102
      %p168 = pneg %p99
      %s169 = smul.u32 16, %s18
      %p170 = scmp.lt.s32.totalorder %s17, 1
      %s171 = scalar_select %p170, %s17, 1
      %p172 = scmp.lt.s32.totalorder %s169, 31
      %s173 = scalar_select %p172, %s169, 31
      %s174 = smul.addr %s171, 32
      %s175 = sadd.s32 %s173, %s174
      %s176 = smul.addr %s175, 8
      %s177 = scalar_lea.vmem %s2, %s176
      %s178 = smul.u32 16, %s18
      %p179 = scmp.lt.s32.totalorder %s17, 1
      %s180 = scalar_select %p179, %s17, 1
      %p181 = scmp.lt.s32.totalorder %s178, 31
      %s182 = scalar_select %p181, %s178, 31
      %s183 = smul.addr %s180, 32
      %s184 = sadd.s32 %s182, %s183
      %s185 = smul.addr %s184, 8
      %s186 = scalar_lea.vmem %s0, %s185
      %s187 = smul.u32 16, %s18
      %p188 = scmp.lt.s32.totalorder %s17, 1
      %s189 = scalar_select %p188, %s17, 1
      %s190 = smul.addr %s189, 2
      %s191 = smul.addr %s190, 4
      %s192 = scalar_lea.vmem %s1, %s191
      %s193 = smul.u32 16, %s18
      %p194 = scmp.lt.s32.totalorder %s17, 1
      %s195 = scalar_select %p194, %s17, 1
      %p196 = scmp.lt.s32.totalorder %s193, 31
      %s197 = scalar_select %p196, %s193, 31
      %s198 = smul.addr %s195, 32
      %s199 = sadd.s32 %s197, %s198
      %s200 = smul.addr %s199, 8
      %s201 = scalar_lea.vmem %s2, %s200
      %s202 = smul.u32 16, %s18
      %v203 = vld [vmem:[%s186] sm:$0xff]
      %v204 = vld [vmem:[%s186 + $0x8] sm:$0xff]
      %v205 = vld [vmem:[%s186 + $0x10] sm:$0xff]
      %v206 = vld [vmem:[%s186 + $0x18] sm:$0xff]
      %v207 = vld [vmem:[%s186 + $0x20] sm:$0xff]
      %v208 = vld [vmem:[%s186 + $0x28] sm:$0xff]
      %v209 = vld [vmem:[%s186 + $0x30] sm:$0xff]
      %v210 = vld [vmem:[%s186 + $0x38] sm:$0xff]
      %v211 = vld [vmem:[%s186 + $0x40] sm:$0xff]
      %v212 = vld [vmem:[%s186 + $0x48] sm:$0xff]
      %v213 = vld [vmem:[%s186 + $0x50] sm:$0xff]
      %v214 = vld [vmem:[%s186 + $0x58] sm:$0xff]
      %v215 = vld [vmem:[%s186 + $0x60] sm:$0xff]
      %v216 = vld [vmem:[%s186 + $0x68] sm:$0xff]
      %v217 = vld [vmem:[%s186 + $0x70] sm:$0xff]
      %v218 = vld [vmem:[%s186 + $0x78] sm:$0xff]
      %v219 = vld [vmem:[%s192] sm:$0x77]
      %v221 = vcombine.high %v219, %v219
      %vm222 = vcmask 23552
      %v224 = vsel %vm222, %v203, 0
      %v227 = vsel %vm222, %v204, 0
      %v230 = vsel %vm222, %v205, 0
      %v233 = vsel %vm222, %v206, 0
      %v236 = vsel %vm222, %v207, 0
      %v239 = vsel %vm222, %v208, 0
      %v242 = vsel %vm222, %v209, 0
      %v245 = vsel %vm222, %v210, 0
      %v248 = vsel %vm222, %v211, 0
      %v251 = vsel %vm222, %v212, 0
      %v254 = vsel %vm222, %v213, 0
      %v257 = vsel %vm222, %v214, 0
      %v260 = vsel %vm222, %v215, 0
      %v263 = vsel %vm222, %v216, 0
      %v266 = vsel %vm222, %v217, 0
      %v269 = vsel %vm222, %v218, 0
      %vm271 = vcmask 1042432
      %v272 = vsel %vm271, %v219, 0
      %v274 = vsel %vm271, %v221, 0
      %276 = vmatprep.subr.mxu0 %v274
      %277 = vmatpush1.msra.mxu0 %v272
      %278 = vmatprep.subr.mxu0 0.0
      %279 = vmatpush1.msra.mxu0 0.0
      %280 = vmatprep.subr.mxu0 0.0
      %281 = vmatpush1.msra.mxu0 0.0
      %282 = vmatprep.subr.mxu0 0.0
      %283 = vmatpush1.msra.mxu0 0.0
      %284 = vmatprep.subr.mxu0 0.0
      %285 = vmatpush1.msra.mxu0 0.0
      %286 = vmatprep.subr.mxu0 0.0
      %287 = vmatpush1.msra.mxu0 0.0
      %288 = vmatprep.subr.mxu0 0.0
      %289 = vmatpush1.msra.mxu0 0.0
      %290 = vmatprep.subr.mxu0 0.0
      %291 = vmatpush1.msra.mxu0 0.0
      %292 = vmatprep.subr.mxu0 0.0
      %293 = vmatpush1.msra.mxu0 0.0
      %294 = vmatprep.subr.mxu0 0.0
      %295 = vmatpush1.msra.mxu0 0.0
      %296 = vmatprep.subr.mxu0 0.0
      %297 = vmatpush1.msra.mxu0 0.0
      %298 = vmatprep.subr.mxu0 0.0
      %299 = vmatpush1.msra.mxu0 0.0
      %300 = vmatprep.subr.mxu0 0.0
      %301 = vmatpush1.msra.mxu0 0.0
      %302 = vmatprep.subr.mxu0 0.0
      %303 = vmatpush1.msra.mxu0 0.0
      %304 = vmatprep.subr.mxu0 0.0
      %305 = vmatpush1.msra.mxu0 0.0
      %306 = vmatprep.subr.mxu0 0.0
      %307 = vmatpush1.msra.mxu0 0.0
      %308 = vmatprep.subr.mxu0 0.0
      %309 = vmatpush1.msra.mxu0 0.0
      %310 = vmatprep.subr.mxu0 0.0
      %311 = vmatpush1.msra.mxu0 0.0
      %312 = vmatprep.subr.mxu0 0.0
      %313 = vmatpush1.msra.mxu0 0.0
      %314 = vmatprep.subr.mxu0 0.0
      %315 = vmatpush1.msra.mxu0 0.0
      %316 = vmatprep.subr.mxu0 0.0
      %317 = vmatpush1.msra.mxu0 0.0
      %318 = vmatprep.subr.mxu0 0.0
      %319 = vmatpush1.msra.mxu0 0.0
      %320 = vmatprep.subr.mxu0 0.0
      %321 = vmatpush1.msra.mxu0 0.0
      %322 = vmatprep.subr.mxu0 0.0
      %323 = vmatpush1.msra.mxu0 0.0
      %324 = vmatprep.subr.mxu0 0.0
      %325 = vmatpush1.msra.mxu0 0.0
      %326 = vmatprep.subr.mxu0 0.0
      %327 = vmatpush1.msra.mxu0 0.0
      %328 = vmatprep.subr.mxu0 0.0
      %329 = vmatpush1.msra.mxu0 0.0
      %330 = vmatprep.subr.mxu0 0.0
      %331 = vmatpush1.msra.mxu0 0.0
      %332 = vmatprep.subr.mxu0 0.0
      %333 = vmatpush1.msra.mxu0 0.0
      %334 = vmatprep.subr.mxu0 0.0
      %335 = vmatpush1.msra.mxu0 0.0
      %336 = vmatprep.subr.mxu0 0.0
      %337 = vmatpush1.msra.mxu0 0.0
      %338 = vmatprep.subr.mxu0 0.0
      %339 = vmatpush1.msra.mxu0 0.0
      %340 = vmatprep.mubr.f32.mxu0 0.0
      %341 = vmatmul.mubr.f32.gmra.mrb[0].mxu0 %v224
      %v342 = vpop.f32.mrb[0].mxu0
      %v343 = vadd.f32 0.0, %v342
      %v344 = vpop.f32.mrb[0].mxu0
      %v345 = vadd.f32 0.0, %v344
      %346 = vmatprep.mubr.f32.mxu0 0.0
      %347 = vmatmul.mubr.f32.gmra.mrb[0].mxu0 %v227
      %v348 = vpop.f32.mrb[0].mxu0
      %v349 = vadd.f32 0.0, %v348
      %v350 = vpop.f32.mrb[0].mxu0
      %v351 = vadd.f32 0.0, %v350
      %352 = vmatprep.mubr.f32.mxu0 0.0
      %353 = vmatmul.mubr.f32.gmra.mrb[0].mxu0 %v230
      %v354 = vpop.f32.mrb[0].mxu0
      %v355 = vadd.f32 0.0, %v354
      %v356 = vpop.f32.mrb[0].mxu0
      %v357 = vadd.f32 0.0, %v356
      %358 = vmatprep.mubr.f32.mxu0 0.0
      %359 = vmatmul.mubr.f32.gmra.mrb[0].mxu0 %v233
      %v360 = vpop.f32.mrb[0].mxu0
      %v361 = vadd.f32 0.0, %v360
      %v362 = vpop.f32.mrb[0].mxu0
      %v363 = vadd.f32 0.0, %v362
      %364 = vmatprep.mubr.f32.mxu0 0.0
      %365 = vmatmul.mubr.f32.gmra.mrb[0].mxu0 %v236
      %v366 = vpop.f32.mrb[0].mxu0
      %v367 = vadd.f32 0.0, %v366
      %v368 = vpop.f32.mrb[0].mxu0
      %v369 = vadd.f32 0.0, %v368
      %370 = vmatprep.mubr.f32.mxu0 0.0
      %371 = vmatmul.mubr.f32.gmra.mrb[0].mxu0 %v239
      %v372 = vpop.f32.mrb[0].mxu0
      %v373 = vadd.f32 0.0, %v372
      %v374 = vpop.f32.mrb[0].mxu0
      %v375 = vadd.f32 0.0, %v374
      %376 = vmatprep.mubr.f32.mxu0 0.0
      %377 = vmatmul.mubr.f32.gmra.mrb[0].mxu0 %v242
      %v378 = vpop.f32.mrb[0].mxu0
      %v379 = vadd.f32 0.0, %v378
      %v380 = vpop.f32.mrb[0].mxu0
      %v381 = vadd.f32 0.0, %v380
      %382 = vmatprep.mubr.f32.mxu0 0.0
      %383 = vmatmul.mubr.f32.gmra.mrb[0].mxu0 %v245
      %v384 = vpop.f32.mrb[0].mxu0
      %v385 = vadd.f32 0.0, %v384
      %v386 = vpop.f32.mrb[0].mxu0
      %v387 = vadd.f32 0.0, %v386
      %388 = vmatprep.mubr.f32.mxu0 0.0
      %389 = vmatmul.mubr.f32.gmra.mrb[0].mxu0 %v248
      %v390 = vpop.f32.mrb[0].mxu0
      %v391 = vadd.f32 0.0, %v390
      %v392 = vpop.f32.mrb[0].mxu0
      %v393 = vadd.f32 0.0, %v392
      %394 = vmatprep.mubr.f32.mxu0 0.0
      %395 = vmatmul.mubr.f32.gmra.mrb[0].mxu0 %v251
      %v396 = vpop.f32.mrb[0].mxu0
      %v397 = vadd.f32 0.0, %v396
      %v398 = vpop.f32.mrb[0].mxu0
      %v399 = vadd.f32 0.0, %v398
      %400 = vmatprep.mubr.f32.mxu0 0.0
      %401 = vmatmul.mubr.f32.gmra.mrb[0].mxu0 %v254
      %v402 = vpop.f32.mrb[0].mxu0
      %v403 = vadd.f32 0.0, %v402
      %v404 = vpop.f32.mrb[0].mxu0
      %v405 = vadd.f32 0.0, %v404
      %406 = vmatprep.mubr.f32.mxu0 0.0
      %407 = vmatmul.mubr.f32.gmra.mrb[0].mxu0 %v257
      %v408 = vpop.f32.mrb[0].mxu0
      %v409 = vadd.f32 0.0, %v408
      %v410 = vpop.f32.mrb[0].mxu0
      %v411 = vadd.f32 0.0, %v410
      %412 = vmatprep.mubr.f32.mxu0 0.0
      %413 = vmatmul.mubr.f32.gmra.mrb[0].mxu0 %v260
      %v414 = vpop.f32.mrb[0].mxu0
      %v415 = vadd.f32 0.0, %v414
      %v416 = vpop.f32.mrb[0].mxu0
      %v417 = vadd.f32 0.0, %v416
      %418 = vmatprep.mubr.f32.mxu0 0.0
      %419 = vmatmul.mubr.f32.gmra.mrb[0].mxu0 %v263
      %v420 = vpop.f32.mrb[0].mxu0
      %v421 = vadd.f32 0.0, %v420
      %v422 = vpop.f32.mrb[0].mxu0
      %v423 = vadd.f32 0.0, %v422
      %424 = vmatprep.mubr.f32.mxu0 0.0
      %425 = vmatmul.mubr.f32.gmra.mrb[0].mxu0 %v266
      %v426 = vpop.f32.mrb[0].mxu0
      %v427 = vadd.f32 0.0, %v426
      %v428 = vpop.f32.mrb[0].mxu0
      %v429 = vadd.f32 0.0, %v428
      %430 = vmatprep.mubr.f32.mxu0 0.0
      %431 = vmatmul.mubr.f32.gmra.mrb[0].mxu0 %v269
      %v432 = vpop.f32.mrb[0].mxu0
      %v433 = vadd.f32 0.0, %v432
      %v434 = vpop.f32.mrb[0].mxu0
      %v435 = vadd.f32 0.0, %v434
      %436 = vdwg.mxu0
      %v437 = vmul.f32 %v203, %v203
      %v438 = vmul.f32 %v204, %v204
      %v439 = vmul.f32 %v205, %v205
      %v440 = vmul.f32 %v206, %v206
      %v441 = vmul.f32 %v207, %v207
      %v442 = vmul.f32 %v208, %v208
      %v443 = vmul.f32 %v209, %v209
      %v444 = vmul.f32 %v210, %v210
      %v445 = vmul.f32 %v211, %v211
      %v446 = vmul.f32 %v212, %v212
      %v447 = vmul.f32 %v213, %v213
      %v448 = vmul.f32 %v214, %v214
      %v449 = vmul.f32 %v215, %v215
      %v450 = vmul.f32 %v216, %v216
      %v451 = vmul.f32 %v217, %v217
      %v452 = vmul.f32 %v218, %v218
      %v453 = vsel %vm222, %v437, 0.0
      %454 = vadd.xlane.f32.xlu0 %v453
      %v455 = vpop.xlane.xlu0 %454
      %v456 = vsel %vm222, %v438, 0.0
      %457 = vadd.xlane.f32.xlu0 %v456
      %v458 = vpop.xlane.xlu0 %457
      %v459 = vsel %vm222, %v439, 0.0
      %460 = vadd.xlane.f32.xlu0 %v459
      %v461 = vpop.xlane.xlu0 %460
      %v462 = vsel %vm222, %v440, 0.0
      %463 = vadd.xlane.f32.xlu0 %v462
      %v464 = vpop.xlane.xlu0 %463
      %v465 = vsel %vm222, %v441, 0.0
      %466 = vadd.xlane.f32.xlu0 %v465
      %v467 = vpop.xlane.xlu0 %466
      %v468 = vsel %vm222, %v442, 0.0
      %469 = vadd.xlane.f32.xlu0 %v468
      %v470 = vpop.xlane.xlu0 %469
      %v471 = vsel %vm222, %v443, 0.0
      %472 = vadd.xlane.f32.xlu0 %v471
      %v473 = vpop.xlane.xlu0 %472
      %v474 = vsel %vm222, %v444, 0.0
      %475 = vadd.xlane.f32.xlu0 %v474
      %v476 = vpop.xlane.xlu0 %475
      %v477 = vsel %vm222, %v445, 0.0
      %478 = vadd.xlane.f32.xlu0 %v477
      %v479 = vpop.xlane.xlu0 %478
      %v480 = vsel %vm222, %v446, 0.0
      %481 = vadd.xlane.f32.xlu0 %v480
      %v482 = vpop.xlane.xlu0 %481
      %v483 = vsel %vm222, %v447, 0.0
      %484 = vadd.xlane.f32.xlu0 %v483
      %v485 = vpop.xlane.xlu0 %484
      %v486 = vsel %vm222, %v448, 0.0
      %487 = vadd.xlane.f32.xlu0 %v486
      %v488 = vpop.xlane.xlu0 %487
      %v489 = vsel %vm222, %v449, 0.0
      %490 = vadd.xlane.f32.xlu0 %v489
      %v491 = vpop.xlane.xlu0 %490
      %v492 = vsel %vm222, %v450, 0.0
      %493 = vadd.xlane.f32.xlu0 %v492
      %v494 = vpop.xlane.xlu0 %493
      %v495 = vsel %vm222, %v451, 0.0
      %496 = vadd.xlane.f32.xlu0 %v495
      %v497 = vpop.xlane.xlu0 %496
      %v498 = vsel %vm222, %v452, 0.0
      %499 = vadd.xlane.f32.xlu0 %v498
      %v500 = vpop.xlane.xlu0 %499
      %v501 = vmul.f32 %v219, %v219
      %v503 = vcombine.high %v501, %v501
      %v505 = vsel %vm271, %v501, 0.0
      %v506 = vrot.slane %v505, 4
      %v507 = vadd.f32 %v505, %v506
      %v508 = vrot.slane %v507, 2
      %v509 = vadd.f32 %v507, %v508
      %v510 = vrot.slane %v509, 1
      %v511 = vadd.f32 %v509, %v510
      %v512 = vsel %vm271, %v503, 0.0
      %v513 = vrot.slane %v512, 4
      %v514 = vadd.f32 %v512, %v513
      %v515 = vrot.slane %v514, 2
      %v516 = vadd.f32 %v514, %v515
      %v517 = vrot.slane %v516, 1
      %v518 = vadd.f32 %v516, %v517
      %v519 = vadd.f32 %v455, %v511
      %v520 = vadd.f32 %v455, %v518
      %v521 = vadd.f32 %v458, %v511
      %v522 = vadd.f32 %v458, %v518
      %v523 = vadd.f32 %v461, %v511
      %v524 = vadd.f32 %v461, %v518
      %v525 = vadd.f32 %v464, %v511
      %v526 = vadd.f32 %v464, %v518
      %v527 = vadd.f32 %v467, %v511
      %v528 = vadd.f32 %v467, %v518
      %v529 = vadd.f32 %v470, %v511
      %v530 = vadd.f32 %v470, %v518
      %v531 = vadd.f32 %v473, %v511
      %v532 = vadd.f32 %v473, %v518
      %v533 = vadd.f32 %v476, %v511
      %v534 = vadd.f32 %v476, %v518
      %v535 = vadd.f32 %v479, %v511
      %v536 = vadd.f32 %v479, %v518
      %v537 = vadd.f32 %v482, %v511
      %v538 = vadd.f32 %v482, %v518
      %v539 = vadd.f32 %v485, %v511
      %v540 = vadd.f32 %v485, %v518
      %v541 = vadd.f32 %v488, %v511
      %v542 = vadd.f32 %v488, %v518
      %v543 = vadd.f32 %v491, %v511
      %v544 = vadd.f32 %v491, %v518
      %v545 = vadd.f32 %v494, %v511
      %v546 = vadd.f32 %v494, %v518
      %v547 = vadd.f32 %v497, %v511
      %v548 = vadd.f32 %v497, %v518
      %v549 = vadd.f32 %v500, %v511
      %v550 = vadd.f32 %v500, %v518
      %v551 = vmul.f32 %v343, 2.0
      %v552 = vmul.f32 %v345, 2.0
      %v553 = vmul.f32 %v349, 2.0
      %v554 = vmul.f32 %v351, 2.0
      %v555 = vmul.f32 %v355, 2.0
      %v556 = vmul.f32 %v357, 2.0
      %v557 = vmul.f32 %v361, 2.0
      %v558 = vmul.f32 %v363, 2.0
      %v559 = vmul.f32 %v367, 2.0
      %v560 = vmul.f32 %v369, 2.0
      %v561 = vmul.f32 %v373, 2.0
      %v562 = vmul.f32 %v375, 2.0
      %v563 = vmul.f32 %v379, 2.0
      %v564 = vmul.f32 %v381, 2.0
      %v565 = vmul.f32 %v385, 2.0
      %v566 = vmul.f32 %v387, 2.0
      %v567 = vmul.f32 %v391, 2.0
      %v568 = vmul.f32 %v393, 2.0
      %v569 = vmul.f32 %v397, 2.0
      %v570 = vmul.f32 %v399, 2.0
      %v571 = vmul.f32 %v403, 2.0
      %v572 = vmul.f32 %v405, 2.0
      %v573 = vmul.f32 %v409, 2.0
      %v574 = vmul.f32 %v411, 2.0
      %v575 = vmul.f32 %v415, 2.0
      %v576 = vmul.f32 %v417, 2.0
      %v577 = vmul.f32 %v421, 2.0
      %v578 = vmul.f32 %v423, 2.0
      %v579 = vmul.f32 %v427, 2.0
      %v580 = vmul.f32 %v429, 2.0
      %v581 = vmul.f32 %v433, 2.0
      %v582 = vmul.f32 %v435, 2.0
      %v583 = vsub.f32 %v519, %v551
      %v584 = vsub.f32 %v520, %v552
      %v585 = vsub.f32 %v521, %v553
      %v586 = vsub.f32 %v522, %v554
      %v587 = vsub.f32 %v523, %v555
      %v588 = vsub.f32 %v524, %v556
      %v589 = vsub.f32 %v525, %v557
      %v590 = vsub.f32 %v526, %v558
      %v591 = vsub.f32 %v527, %v559
      %v592 = vsub.f32 %v528, %v560
      %v593 = vsub.f32 %v529, %v561
      %v594 = vsub.f32 %v530, %v562
      %v595 = vsub.f32 %v531, %v563
      %v596 = vsub.f32 %v532, %v564
      %v597 = vsub.f32 %v533, %v565
      %v598 = vsub.f32 %v534, %v566
      %v599 = vsub.f32 %v535, %v567
      %v600 = vsub.f32 %v536, %v568
      %v601 = vsub.f32 %v537, %v569
      %v602 = vsub.f32 %v538, %v570
      %v603 = vsub.f32 %v539, %v571
      %v604 = vsub.f32 %v540, %v572
      %v605 = vsub.f32 %v541, %v573
      %v606 = vsub.f32 %v542, %v574
      %v607 = vsub.f32 %v543, %v575
      %v608 = vsub.f32 %v544, %v576
      %v609 = vsub.f32 %v545, %v577
      %v610 = vsub.f32 %v546, %v578
      %v611 = vsub.f32 %v547, %v579
      %v612 = vsub.f32 %v548, %v580
      %v613 = vsub.f32 %v549, %v581
      %v614 = vsub.f32 %v550, %v582
      %v615 = vlaneseq
      %v616 = vand.u32 %v615, 127
      %v617 = vadd.s32 %v616, 128
      %v618 = vcvt.s32.f32 %v616
      %v619 = vcvt.s32.f32 %v617
      %v620 = vmin.f32 %v583, %v584
      %621 = vmin.xlane.f32.xlu0 %v620
      %v622 = vpop.xlane.xlu0 %621
      %v623 = vmin.f32 %v585, %v586
      %624 = vmin.xlane.f32.xlu0 %v623
      %v625 = vpop.xlane.xlu0 %624
      %v626 = vmin.f32 %v587, %v588
      %627 = vmin.xlane.f32.xlu0 %v626
      %v628 = vpop.xlane.xlu0 %627
      %v629 = vmin.f32 %v589, %v590
      %630 = vmin.xlane.f32.xlu0 %v629
      %v631 = vpop.xlane.xlu0 %630
      %v632 = vmin.f32 %v591, %v592
      %633 = vmin.xlane.f32.xlu0 %v632
      %v634 = vpop.xlane.xlu0 %633
      %v635 = vmin.f32 %v593, %v594
      %636 = vmin.xlane.f32.xlu0 %v635
      %v637 = vpop.xlane.xlu0 %636
      %v638 = vmin.f32 %v595, %v596
      %639 = vmin.xlane.f32.xlu0 %v638
      %v640 = vpop.xlane.xlu0 %639
      %v641 = vmin.f32 %v597, %v598
      %642 = vmin.xlane.f32.xlu0 %v641
      %v643 = vpop.xlane.xlu0 %642
      %v644 = vmin.f32 %v599, %v600
      %645 = vmin.xlane.f32.xlu0 %v644
      %v646 = vpop.xlane.xlu0 %645
      %v647 = vmin.f32 %v601, %v602
      %648 = vmin.xlane.f32.xlu0 %v647
      %v649 = vpop.xlane.xlu0 %648
      %v650 = vmin.f32 %v603, %v604
      %651 = vmin.xlane.f32.xlu0 %v650
      %v652 = vpop.xlane.xlu0 %651
      %v653 = vmin.f32 %v605, %v606
      %654 = vmin.xlane.f32.xlu0 %v653
      %v655 = vpop.xlane.xlu0 %654
      %v656 = vmin.f32 %v607, %v608
      %657 = vmin.xlane.f32.xlu0 %v656
      %v658 = vpop.xlane.xlu0 %657
      %v659 = vmin.f32 %v609, %v610
      %660 = vmin.xlane.f32.xlu0 %v659
      %v661 = vpop.xlane.xlu0 %660
      %v662 = vmin.f32 %v611, %v612
      %663 = vmin.xlane.f32.xlu0 %v662
      %v664 = vpop.xlane.xlu0 %663
      %v665 = vmin.f32 %v613, %v614
      %666 = vmin.xlane.f32.xlu0 %v665
      %v667 = vpop.xlane.xlu0 %666
      %vm668 = vcmp.le.f32.partialorder %v583, %v622
      %vm669 = vcmp.le.f32.partialorder %v584, %v622
      %vm670 = vcmp.le.f32.partialorder %v585, %v625
      %vm671 = vcmp.le.f32.partialorder %v586, %v625
      %vm672 = vcmp.le.f32.partialorder %v587, %v628
      %vm673 = vcmp.le.f32.partialorder %v588, %v628
      %vm674 = vcmp.le.f32.partialorder %v589, %v631
      %vm675 = vcmp.le.f32.partialorder %v590, %v631
      %vm676 = vcmp.le.f32.partialorder %v591, %v634
      %vm677 = vcmp.le.f32.partialorder %v592, %v634
      %vm678 = vcmp.le.f32.partialorder %v593, %v637
      %vm679 = vcmp.le.f32.partialorder %v594, %v637
      %vm680 = vcmp.le.f32.partialorder %v595, %v640
      %vm681 = vcmp.le.f32.partialorder %v596, %v640
      %vm682 = vcmp.le.f32.partialorder %v597, %v643
      %vm683 = vcmp.le.f32.partialorder %v598, %v643
      %vm684 = vcmp.le.f32.partialorder %v599, %v646
      %vm685 = vcmp.le.f32.partialorder %v600, %v646
      %vm686 = vcmp.le.f32.partialorder %v601, %v649
      %vm687 = vcmp.le.f32.partialorder %v602, %v649
      %vm688 = vcmp.le.f32.partialorder %v603, %v652
      %vm689 = vcmp.le.f32.partialorder %v604, %v652
      %vm690 = vcmp.le.f32.partialorder %v605, %v655
      %vm691 = vcmp.le.f32.partialorder %v606, %v655
      %vm692 = vcmp.le.f32.partialorder %v607, %v658
      %vm693 = vcmp.le.f32.partialorder %v608, %v658
      %vm694 = vcmp.le.f32.partialorder %v609, %v661
      %vm695 = vcmp.le.f32.partialorder %v610, %v661
      %vm696 = vcmp.le.f32.partialorder %v611, %v664
      %vm697 = vcmp.le.f32.partialorder %v612, %v664
      %vm698 = vcmp.le.f32.partialorder %v613, %v667
      %vm699 = vcmp.le.f32.partialorder %v614, %v667
      %v700 = vsel %vm668, %v618, 256.0
      %v701 = vsel %vm669, %v619, 256.0
      %v702 = vsel %vm670, %v618, 256.0
      %v703 = vsel %vm671, %v619, 256.0
      %v704 = vsel %vm672, %v618, 256.0
      %v705 = vsel %vm673, %v619, 256.0
      %v706 = vsel %vm674, %v618, 256.0
      %v707 = vsel %vm675, %v619, 256.0
      %v708 = vsel %vm676, %v618, 256.0
      %v709 = vsel %vm677, %v619, 256.0
      %v710 = vsel %vm678, %v618, 256.0
      %v711 = vsel %vm679, %v619, 256.0
      %v712 = vsel %vm680, %v618, 256.0
      %v713 = vsel %vm681, %v619, 256.0
      %v714 = vsel %vm682, %v618, 256.0
      %v715 = vsel %vm683, %v619, 256.0
      %v716 = vsel %vm684, %v618, 256.0
      %v717 = vsel %vm685, %v619, 256.0
      %v718 = vsel %vm686, %v618, 256.0
      %v719 = vsel %vm687, %v619, 256.0
      %v720 = vsel %vm688, %v618, 256.0
      %v721 = vsel %vm689, %v619, 256.0
      %v722 = vsel %vm690, %v618, 256.0
      %v723 = vsel %vm691, %v619, 256.0
      %v724 = vsel %vm692, %v618, 256.0
      %v725 = vsel %vm693, %v619, 256.0
      %v726 = vsel %vm694, %v618, 256.0
      %v727 = vsel %vm695, %v619, 256.0
      %v728 = vsel %vm696, %v618, 256.0
      %v729 = vsel %vm697, %v619, 256.0
      %v730 = vsel %vm698, %v618, 256.0
      %v731 = vsel %vm699, %v619, 256.0
      %v732 = vmin.f32 %v700, %v701
      %733 = vmin.xlane.f32.xlu0 %v732
      %v734 = vpop.xlane.xlu0 %733
      %v735 = vmin.f32 %v702, %v703
      %736 = vmin.xlane.f32.xlu0 %v735
      %v737 = vpop.xlane.xlu0 %736
      %v738 = vmin.f32 %v704, %v705
      %739 = vmin.xlane.f32.xlu0 %v738
      %v740 = vpop.xlane.xlu0 %739
      %v741 = vmin.f32 %v706, %v707
      %742 = vmin.xlane.f32.xlu0 %v741
      %v743 = vpop.xlane.xlu0 %742
      %v744 = vmin.f32 %v708, %v709
      %745 = vmin.xlane.f32.xlu0 %v744
      %v746 = vpop.xlane.xlu0 %745
      %v747 = vmin.f32 %v710, %v711
      %748 = vmin.xlane.f32.xlu0 %v747
      %v749 = vpop.xlane.xlu0 %748
      %v750 = vmin.f32 %v712, %v713
      %751 = vmin.xlane.f32.xlu0 %v750
      %v752 = vpop.xlane.xlu0 %751
      %v753 = vmin.f32 %v714, %v715
      %754 = vmin.xlane.f32.xlu0 %v753
      %v755 = vpop.xlane.xlu0 %754
      %v756 = vmin.f32 %v716, %v717
      %757 = vmin.xlane.f32.xlu0 %v756
      %v758 = vpop.xlane.xlu0 %757
      %v759 = vmin.f32 %v718, %v719
      %760 = vmin.xlane.f32.xlu0 %v759
      %v761 = vpop.xlane.xlu0 %760
      %v762 = vmin.f32 %v720, %v721
      %763 = vmin.xlane.f32.xlu0 %v762
      %v764 = vpop.xlane.xlu0 %763
      %v765 = vmin.f32 %v722, %v723
      %766 = vmin.xlane.f32.xlu0 %v765
      %v767 = vpop.xlane.xlu0 %766
      %v768 = vmin.f32 %v724, %v725
      %769 = vmin.xlane.f32.xlu0 %v768
      %v770 = vpop.xlane.xlu0 %769
      %v771 = vmin.f32 %v726, %v727
      %772 = vmin.xlane.f32.xlu0 %v771
      %v773 = vpop.xlane.xlu0 %772
      %v774 = vmin.f32 %v728, %v729
      %775 = vmin.xlane.f32.xlu0 %v774
      %v776 = vpop.xlane.xlu0 %775
      %v777 = vmin.f32 %v730, %v731
      %778 = vmin.xlane.f32.xlu0 %v777
      %v779 = vpop.xlane.xlu0 %778
      %vm780 = vcmp.eq.f32.partialorder %v618, %v734
      %vm781 = vcmp.eq.f32.partialorder %v619, %v734
      %vm782 = vcmp.eq.f32.partialorder %v618, %v737
      %vm783 = vcmp.eq.f32.partialorder %v619, %v737
      %vm784 = vcmp.eq.f32.partialorder %v618, %v740
      %vm785 = vcmp.eq.f32.partialorder %v619, %v740
      %vm786 = vcmp.eq.f32.partialorder %v618, %v743
      %vm787 = vcmp.eq.f32.partialorder %v619, %v743
      %vm788 = vcmp.eq.f32.partialorder %v618, %v746
      %vm789 = vcmp.eq.f32.partialorder %v619, %v746
      %vm790 = vcmp.eq.f32.partialorder %v618, %v749
      %vm791 = vcmp.eq.f32.partialorder %v619, %v749
      %vm792 = vcmp.eq.f32.partialorder %v618, %v752
      %vm793 = vcmp.eq.f32.partialorder %v619, %v752
      %vm794 = vcmp.eq.f32.partialorder %v618, %v755
      %vm795 = vcmp.eq.f32.partialorder %v619, %v755
      %vm796 = vcmp.eq.f32.partialorder %v618, %v758
      %vm797 = vcmp.eq.f32.partialorder %v619, %v758
      %vm798 = vcmp.eq.f32.partialorder %v618, %v761
      %vm799 = vcmp.eq.f32.partialorder %v619, %v761
      %vm800 = vcmp.eq.f32.partialorder %v618, %v764
      %vm801 = vcmp.eq.f32.partialorder %v619, %v764
      %vm802 = vcmp.eq.f32.partialorder %v618, %v767
      %vm803 = vcmp.eq.f32.partialorder %v619, %v767
      %vm804 = vcmp.eq.f32.partialorder %v618, %v770
      %vm805 = vcmp.eq.f32.partialorder %v619, %v770
      %vm806 = vcmp.eq.f32.partialorder %v618, %v773
      %vm807 = vcmp.eq.f32.partialorder %v619, %v773
      %vm808 = vcmp.eq.f32.partialorder %v618, %v776
      %vm809 = vcmp.eq.f32.partialorder %v619, %v776
      %vm810 = vcmp.eq.f32.partialorder %v618, %v779
      %vm811 = vcmp.eq.f32.partialorder %v619, %v779
      %v812 = vsel %vm780, inf, %v583
      %v813 = vsel %vm781, inf, %v584
      %v814 = vsel %vm782, inf, %v585
      %v815 = vsel %vm783, inf, %v586
      %v816 = vsel %vm784, inf, %v587
      %v817 = vsel %vm785, inf, %v588
      %v818 = vsel %vm786, inf, %v589
      %v819 = vsel %vm787, inf, %v590
      %v820 = vsel %vm788, inf, %v591
      %v821 = vsel %vm789, inf, %v592
      %v822 = vsel %vm790, inf, %v593
      %v823 = vsel %vm791, inf, %v594
      %v824 = vsel %vm792, inf, %v595
      %v825 = vsel %vm793, inf, %v596
      %v826 = vsel %vm794, inf, %v597
      %v827 = vsel %vm795, inf, %v598
      %v828 = vsel %vm796, inf, %v599
      %v829 = vsel %vm797, inf, %v600
      %v830 = vsel %vm798, inf, %v601
      %v831 = vsel %vm799, inf, %v602
      %v832 = vsel %vm800, inf, %v603
      %v833 = vsel %vm801, inf, %v604
      %v834 = vsel %vm802, inf, %v605
      %v835 = vsel %vm803, inf, %v606
      %v836 = vsel %vm804, inf, %v607
      %v837 = vsel %vm805, inf, %v608
      %v838 = vsel %vm806, inf, %v609
      %v839 = vsel %vm807, inf, %v610
      %v840 = vsel %vm808, inf, %v611
      %v841 = vsel %vm809, inf, %v612
      %v842 = vsel %vm810, inf, %v613
      %v843 = vsel %vm811, inf, %v614
      %v844 = vmin.f32 %v812, %v813
      %845 = vmin.xlane.f32.xlu0 %v844
      %v846 = vpop.xlane.xlu0 %845
      %v847 = vmin.f32 %v814, %v815
      %848 = vmin.xlane.f32.xlu0 %v847
      %v849 = vpop.xlane.xlu0 %848
      %v850 = vmin.f32 %v816, %v817
      %851 = vmin.xlane.f32.xlu0 %v850
      %v852 = vpop.xlane.xlu0 %851
      %v853 = vmin.f32 %v818, %v819
      %854 = vmin.xlane.f32.xlu0 %v853
      %v855 = vpop.xlane.xlu0 %854
      %v856 = vmin.f32 %v820, %v821
      %857 = vmin.xlane.f32.xlu0 %v856
      %v858 = vpop.xlane.xlu0 %857
      %v859 = vmin.f32 %v822, %v823
      %860 = vmin.xlane.f32.xlu0 %v859
      %v861 = vpop.xlane.xlu0 %860
      %v862 = vmin.f32 %v824, %v825
      %863 = vmin.xlane.f32.xlu0 %v862
      %v864 = vpop.xlane.xlu0 %863
      %v865 = vmin.f32 %v826, %v827
      %866 = vmin.xlane.f32.xlu0 %v865
      %v867 = vpop.xlane.xlu0 %866
      %v868 = vmin.f32 %v828, %v829
      %869 = vmin.xlane.f32.xlu0 %v868
      %v870 = vpop.xlane.xlu0 %869
      %v871 = vmin.f32 %v830, %v831
      %872 = vmin.xlane.f32.xlu0 %v871
      %v873 = vpop.xlane.xlu0 %872
      %v874 = vmin.f32 %v832, %v833
      %875 = vmin.xlane.f32.xlu0 %v874
      %v876 = vpop.xlane.xlu0 %875
      %v877 = vmin.f32 %v834, %v835
      %878 = vmin.xlane.f32.xlu0 %v877
      %v879 = vpop.xlane.xlu0 %878
      %v880 = vmin.f32 %v836, %v837
      %881 = vmin.xlane.f32.xlu0 %v880
      %v882 = vpop.xlane.xlu0 %881
      %v883 = vmin.f32 %v838, %v839
      %884 = vmin.xlane.f32.xlu0 %v883
      %v885 = vpop.xlane.xlu0 %884
      %v886 = vmin.f32 %v840, %v841
      %887 = vmin.xlane.f32.xlu0 %v886
      %v888 = vpop.xlane.xlu0 %887
      %v889 = vmin.f32 %v842, %v843
      %890 = vmin.xlane.f32.xlu0 %v889
      %v891 = vpop.xlane.xlu0 %890
      %vm892 = vcmp.le.f32.partialorder %v812, %v846
      %vm893 = vcmp.le.f32.partialorder %v813, %v846
      %vm894 = vcmp.le.f32.partialorder %v814, %v849
      %vm895 = vcmp.le.f32.partialorder %v815, %v849
      %vm896 = vcmp.le.f32.partialorder %v816, %v852
      %vm897 = vcmp.le.f32.partialorder %v817, %v852
      %vm898 = vcmp.le.f32.partialorder %v818, %v855
      %vm899 = vcmp.le.f32.partialorder %v819, %v855
      %vm900 = vcmp.le.f32.partialorder %v820, %v858
      %vm901 = vcmp.le.f32.partialorder %v821, %v858
      %vm902 = vcmp.le.f32.partialorder %v822, %v861
      %vm903 = vcmp.le.f32.partialorder %v823, %v861
      %vm904 = vcmp.le.f32.partialorder %v824, %v864
      %vm905 = vcmp.le.f32.partialorder %v825, %v864
      %vm906 = vcmp.le.f32.partialorder %v826, %v867
      %vm907 = vcmp.le.f32.partialorder %v827, %v867
      %vm908 = vcmp.le.f32.partialorder %v828, %v870
      %vm909 = vcmp.le.f32.partialorder %v829, %v870
      %vm910 = vcmp.le.f32.partialorder %v830, %v873
      %vm911 = vcmp.le.f32.partialorder %v831, %v873
      %vm912 = vcmp.le.f32.partialorder %v832, %v876
      %vm913 = vcmp.le.f32.partialorder %v833, %v876
      %vm914 = vcmp.le.f32.partialorder %v834, %v879
      %vm915 = vcmp.le.f32.partialorder %v835, %v879
      %vm916 = vcmp.le.f32.partialorder %v836, %v882
      %vm917 = vcmp.le.f32.partialorder %v837, %v882
      %vm918 = vcmp.le.f32.partialorder %v838, %v885
      %vm919 = vcmp.le.f32.partialorder %v839, %v885
      %vm920 = vcmp.le.f32.partialorder %v840, %v888
      %vm921 = vcmp.le.f32.partialorder %v841, %v888
      %vm922 = vcmp.le.f32.partialorder %v842, %v891
      %vm923 = vcmp.le.f32.partialorder %v843, %v891
      %v924 = vsel %vm892, %v618, 256.0
      %v925 = vsel %vm893, %v619, 256.0
      %v926 = vsel %vm894, %v618, 256.0
      %v927 = vsel %vm895, %v619, 256.0
      %v928 = vsel %vm896, %v618, 256.0
      %v929 = vsel %vm897, %v619, 256.0
      %v930 = vsel %vm898, %v618, 256.0
      %v931 = vsel %vm899, %v619, 256.0
      %v932 = vsel %vm900, %v618, 256.0
      %v933 = vsel %vm901, %v619, 256.0
      %v934 = vsel %vm902, %v618, 256.0
      %v935 = vsel %vm903, %v619, 256.0
      %v936 = vsel %vm904, %v618, 256.0
      %v937 = vsel %vm905, %v619, 256.0
      %v938 = vsel %vm906, %v618, 256.0
      %v939 = vsel %vm907, %v619, 256.0
      %v940 = vsel %vm908, %v618, 256.0
      %v941 = vsel %vm909, %v619, 256.0
      %v942 = vsel %vm910, %v618, 256.0
      %v943 = vsel %vm911, %v619, 256.0
      %v944 = vsel %vm912, %v618, 256.0
      %v945 = vsel %vm913, %v619, 256.0
      %v946 = vsel %vm914, %v618, 256.0
      %v947 = vsel %vm915, %v619, 256.0
      %v948 = vsel %vm916, %v618, 256.0
      %v949 = vsel %vm917, %v619, 256.0
      %v950 = vsel %vm918, %v618, 256.0
      %v951 = vsel %vm919, %v619, 256.0
      %v952 = vsel %vm920, %v618, 256.0
      %v953 = vsel %vm921, %v619, 256.0
      %v954 = vsel %vm922, %v618, 256.0
      %v955 = vsel %vm923, %v619, 256.0
      %v956 = vmin.f32 %v924, %v925
      %957 = vmin.xlane.f32.xlu0 %v956
      %v958 = vpop.xlane.xlu0 %957
      %v959 = vmin.f32 %v926, %v927
      %960 = vmin.xlane.f32.xlu0 %v959
      %v961 = vpop.xlane.xlu0 %960
      %v962 = vmin.f32 %v928, %v929
      %963 = vmin.xlane.f32.xlu0 %v962
      %v964 = vpop.xlane.xlu0 %963
      %v965 = vmin.f32 %v930, %v931
      %966 = vmin.xlane.f32.xlu0 %v965
      %v967 = vpop.xlane.xlu0 %966
      %v968 = vmin.f32 %v932, %v933
      %969 = vmin.xlane.f32.xlu0 %v968
      %v970 = vpop.xlane.xlu0 %969
      %v971 = vmin.f32 %v934, %v935
      %972 = vmin.xlane.f32.xlu0 %v971
      %v973 = vpop.xlane.xlu0 %972
      %v974 = vmin.f32 %v936, %v937
      %975 = vmin.xlane.f32.xlu0 %v974
      %v976 = vpop.xlane.xlu0 %975
      %v977 = vmin.f32 %v938, %v939
      %978 = vmin.xlane.f32.xlu0 %v977
      %v979 = vpop.xlane.xlu0 %978
      %v980 = vmin.f32 %v940, %v941
      %981 = vmin.xlane.f32.xlu0 %v980
      %v982 = vpop.xlane.xlu0 %981
      %v983 = vmin.f32 %v942, %v943
      %984 = vmin.xlane.f32.xlu0 %v983
      %v985 = vpop.xlane.xlu0 %984
      %v986 = vmin.f32 %v944, %v945
      %987 = vmin.xlane.f32.xlu0 %v986
      %v988 = vpop.xlane.xlu0 %987
      %v989 = vmin.f32 %v946, %v947
      %990 = vmin.xlane.f32.xlu0 %v989
      %v991 = vpop.xlane.xlu0 %990
      %v992 = vmin.f32 %v948, %v949
      %993 = vmin.xlane.f32.xlu0 %v992
      %v994 = vpop.xlane.xlu0 %993
      %v995 = vmin.f32 %v950, %v951
      %996 = vmin.xlane.f32.xlu0 %v995
      %v997 = vpop.xlane.xlu0 %996
      %v998 = vmin.f32 %v952, %v953
      %999 = vmin.xlane.f32.xlu0 %v998
      %v1000 = vpop.xlane.xlu0 %999
      %v1001 = vmin.f32 %v954, %v955
      %1002 = vmin.xlane.f32.xlu0 %v1001
      %v1003 = vpop.xlane.xlu0 %1002
      %vm1004 = vcmp.eq.f32.partialorder %v618, %v958
      %vm1005 = vcmp.eq.f32.partialorder %v619, %v958
      %vm1006 = vcmp.eq.f32.partialorder %v618, %v961
      %vm1007 = vcmp.eq.f32.partialorder %v619, %v961
      %vm1008 = vcmp.eq.f32.partialorder %v618, %v964
      %vm1009 = vcmp.eq.f32.partialorder %v619, %v964
      %vm1010 = vcmp.eq.f32.partialorder %v618, %v967
      %vm1011 = vcmp.eq.f32.partialorder %v619, %v967
      %vm1012 = vcmp.eq.f32.partialorder %v618, %v970
      %vm1013 = vcmp.eq.f32.partialorder %v619, %v970
      %vm1014 = vcmp.eq.f32.partialorder %v618, %v973
      %vm1015 = vcmp.eq.f32.partialorder %v619, %v973
      %vm1016 = vcmp.eq.f32.partialorder %v618, %v976
      %vm1017 = vcmp.eq.f32.partialorder %v619, %v976
      %vm1018 = vcmp.eq.f32.partialorder %v618, %v979
      %vm1019 = vcmp.eq.f32.partialorder %v619, %v979
      %vm1020 = vcmp.eq.f32.partialorder %v618, %v982
      %vm1021 = vcmp.eq.f32.partialorder %v619, %v982
      %vm1022 = vcmp.eq.f32.partialorder %v618, %v985
      %vm1023 = vcmp.eq.f32.partialorder %v619, %v985
      %vm1024 = vcmp.eq.f32.partialorder %v618, %v988
      %vm1025 = vcmp.eq.f32.partialorder %v619, %v988
      %vm1026 = vcmp.eq.f32.partialorder %v618, %v991
      %vm1027 = vcmp.eq.f32.partialorder %v619, %v991
      %vm1028 = vcmp.eq.f32.partialorder %v618, %v994
      %vm1029 = vcmp.eq.f32.partialorder %v619, %v994
      %vm1030 = vcmp.eq.f32.partialorder %v618, %v997
      %vm1031 = vcmp.eq.f32.partialorder %v619, %v997
      %vm1032 = vcmp.eq.f32.partialorder %v618, %v1000
      %vm1033 = vcmp.eq.f32.partialorder %v619, %v1000
      %vm1034 = vcmp.eq.f32.partialorder %v618, %v1003
      %vm1035 = vcmp.eq.f32.partialorder %v619, %v1003
      %v1036 = vsel %vm1004, inf, %v812
      %v1037 = vsel %vm1005, inf, %v813
      %v1038 = vsel %vm1006, inf, %v814
      %v1039 = vsel %vm1007, inf, %v815
      %v1040 = vsel %vm1008, inf, %v816
      %v1041 = vsel %vm1009, inf, %v817
      %v1042 = vsel %vm1010, inf, %v818
      %v1043 = vsel %vm1011, inf, %v819
      %v1044 = vsel %vm1012, inf, %v820
      %v1045 = vsel %vm1013, inf, %v821
      %v1046 = vsel %vm1014, inf, %v822
      %v1047 = vsel %vm1015, inf, %v823
      %v1048 = vsel %vm1016, inf, %v824
      %v1049 = vsel %vm1017, inf, %v825
      %v1050 = vsel %vm1018, inf, %v826
      %v1051 = vsel %vm1019, inf, %v827
      %v1052 = vsel %vm1020, inf, %v828
      %v1053 = vsel %vm1021, inf, %v829
      %v1054 = vsel %vm1022, inf, %v830
      %v1055 = vsel %vm1023, inf, %v831
      %v1056 = vsel %vm1024, inf, %v832
      %v1057 = vsel %vm1025, inf, %v833
      %v1058 = vsel %vm1026, inf, %v834
      %v1059 = vsel %vm1027, inf, %v835
      %v1060 = vsel %vm1028, inf, %v836
      %v1061 = vsel %vm1029, inf, %v837
      %v1062 = vsel %vm1030, inf, %v838
      %v1063 = vsel %vm1031, inf, %v839
      %v1064 = vsel %vm1032, inf, %v840
      %v1065 = vsel %vm1033, inf, %v841
      %v1066 = vsel %vm1034, inf, %v842
      %v1067 = vsel %vm1035, inf, %v843
      %v1068 = vmin.f32 %v1036, %v1037
      %1069 = vmin.xlane.f32.xlu0 %v1068
      %v1070 = vpop.xlane.xlu0 %1069
      %v1071 = vmin.f32 %v1038, %v1039
      %1072 = vmin.xlane.f32.xlu0 %v1071
      %v1073 = vpop.xlane.xlu0 %1072
      %v1074 = vmin.f32 %v1040, %v1041
      %1075 = vmin.xlane.f32.xlu0 %v1074
      %v1076 = vpop.xlane.xlu0 %1075
      %v1077 = vmin.f32 %v1042, %v1043
      %1078 = vmin.xlane.f32.xlu0 %v1077
      %v1079 = vpop.xlane.xlu0 %1078
      %v1080 = vmin.f32 %v1044, %v1045
      %1081 = vmin.xlane.f32.xlu0 %v1080
      %v1082 = vpop.xlane.xlu0 %1081
      %v1083 = vmin.f32 %v1046, %v1047
      %1084 = vmin.xlane.f32.xlu0 %v1083
      %v1085 = vpop.xlane.xlu0 %1084
      %v1086 = vmin.f32 %v1048, %v1049
      %1087 = vmin.xlane.f32.xlu0 %v1086
      %v1088 = vpop.xlane.xlu0 %1087
      %v1089 = vmin.f32 %v1050, %v1051
      %1090 = vmin.xlane.f32.xlu0 %v1089
      %v1091 = vpop.xlane.xlu0 %1090
      %v1092 = vmin.f32 %v1052, %v1053
      %1093 = vmin.xlane.f32.xlu0 %v1092
      %v1094 = vpop.xlane.xlu0 %1093
      %v1095 = vmin.f32 %v1054, %v1055
      %1096 = vmin.xlane.f32.xlu0 %v1095
      %v1097 = vpop.xlane.xlu0 %1096
      %v1098 = vmin.f32 %v1056, %v1057
      %1099 = vmin.xlane.f32.xlu0 %v1098
      %v1100 = vpop.xlane.xlu0 %1099
      %v1101 = vmin.f32 %v1058, %v1059
      %1102 = vmin.xlane.f32.xlu0 %v1101
      %v1103 = vpop.xlane.xlu0 %1102
      %v1104 = vmin.f32 %v1060, %v1061
      %1105 = vmin.xlane.f32.xlu0 %v1104
      %v1106 = vpop.xlane.xlu0 %1105
      %v1107 = vmin.f32 %v1062, %v1063
      %1108 = vmin.xlane.f32.xlu0 %v1107
      %v1109 = vpop.xlane.xlu0 %1108
      %v1110 = vmin.f32 %v1064, %v1065
      %1111 = vmin.xlane.f32.xlu0 %v1110
      %v1112 = vpop.xlane.xlu0 %1111
      %v1113 = vmin.f32 %v1066, %v1067
      %1114 = vmin.xlane.f32.xlu0 %v1113
      %v1115 = vpop.xlane.xlu0 %1114
      %vm1116 = vcmp.le.f32.partialorder %v1036, %v1070
      %vm1117 = vcmp.le.f32.partialorder %v1037, %v1070
      %vm1118 = vcmp.le.f32.partialorder %v1038, %v1073
      %vm1119 = vcmp.le.f32.partialorder %v1039, %v1073
      %vm1120 = vcmp.le.f32.partialorder %v1040, %v1076
      %vm1121 = vcmp.le.f32.partialorder %v1041, %v1076
      %vm1122 = vcmp.le.f32.partialorder %v1042, %v1079
      %vm1123 = vcmp.le.f32.partialorder %v1043, %v1079
      %vm1124 = vcmp.le.f32.partialorder %v1044, %v1082
      %vm1125 = vcmp.le.f32.partialorder %v1045, %v1082
      %vm1126 = vcmp.le.f32.partialorder %v1046, %v1085
      %vm1127 = vcmp.le.f32.partialorder %v1047, %v1085
      %vm1128 = vcmp.le.f32.partialorder %v1048, %v1088
      %vm1129 = vcmp.le.f32.partialorder %v1049, %v1088
      %vm1130 = vcmp.le.f32.partialorder %v1050, %v1091
      %vm1131 = vcmp.le.f32.partialorder %v1051, %v1091
      %vm1132 = vcmp.le.f32.partialorder %v1052, %v1094
      %vm1133 = vcmp.le.f32.partialorder %v1053, %v1094
      %vm1134 = vcmp.le.f32.partialorder %v1054, %v1097
      %vm1135 = vcmp.le.f32.partialorder %v1055, %v1097
      %vm1136 = vcmp.le.f32.partialorder %v1056, %v1100
      %vm1137 = vcmp.le.f32.partialorder %v1057, %v1100
      %vm1138 = vcmp.le.f32.partialorder %v1058, %v1103
      %vm1139 = vcmp.le.f32.partialorder %v1059, %v1103
      %vm1140 = vcmp.le.f32.partialorder %v1060, %v1106
      %vm1141 = vcmp.le.f32.partialorder %v1061, %v1106
      %vm1142 = vcmp.le.f32.partialorder %v1062, %v1109
      %vm1143 = vcmp.le.f32.partialorder %v1063, %v1109
      %vm1144 = vcmp.le.f32.partialorder %v1064, %v1112
      %vm1145 = vcmp.le.f32.partialorder %v1065, %v1112
      %vm1146 = vcmp.le.f32.partialorder %v1066, %v1115
      %vm1147 = vcmp.le.f32.partialorder %v1067, %v1115
      %v1148 = vsel %vm1116, %v618, 256.0
      %v1149 = vsel %vm1117, %v619, 256.0
      %v1150 = vsel %vm1118, %v618, 256.0
      %v1151 = vsel %vm1119, %v619, 256.0
      %v1152 = vsel %vm1120, %v618, 256.0
      %v1153 = vsel %vm1121, %v619, 256.0
      %v1154 = vsel %vm1122, %v618, 256.0
      %v1155 = vsel %vm1123, %v619, 256.0
      %v1156 = vsel %vm1124, %v618, 256.0
      %v1157 = vsel %vm1125, %v619, 256.0
      %v1158 = vsel %vm1126, %v618, 256.0
      %v1159 = vsel %vm1127, %v619, 256.0
      %v1160 = vsel %vm1128, %v618, 256.0
      %v1161 = vsel %vm1129, %v619, 256.0
      %v1162 = vsel %vm1130, %v618, 256.0
      %v1163 = vsel %vm1131, %v619, 256.0
      %v1164 = vsel %vm1132, %v618, 256.0
      %v1165 = vsel %vm1133, %v619, 256.0
      %v1166 = vsel %vm1134, %v618, 256.0
      %v1167 = vsel %vm1135, %v619, 256.0
      %v1168 = vsel %vm1136, %v618, 256.0
      %v1169 = vsel %vm1137, %v619, 256.0
      %v1170 = vsel %vm1138, %v618, 256.0
      %v1171 = vsel %vm1139, %v619, 256.0
      %v1172 = vsel %vm1140, %v618, 256.0
      %v1173 = vsel %vm1141, %v619, 256.0
      %v1174 = vsel %vm1142, %v618, 256.0
      %v1175 = vsel %vm1143, %v619, 256.0
      %v1176 = vsel %vm1144, %v618, 256.0
      %v1177 = vsel %vm1145, %v619, 256.0
      %v1178 = vsel %vm1146, %v618, 256.0
      %v1179 = vsel %vm1147, %v619, 256.0
      %v1180 = vmin.f32 %v1148, %v1149
      %1181 = vmin.xlane.f32.xlu0 %v1180
      %v1182 = vpop.xlane.xlu0 %1181
      %v1183 = vmin.f32 %v1150, %v1151
      %1184 = vmin.xlane.f32.xlu0 %v1183
      %v1185 = vpop.xlane.xlu0 %1184
      %v1186 = vmin.f32 %v1152, %v1153
      %1187 = vmin.xlane.f32.xlu0 %v1186
      %v1188 = vpop.xlane.xlu0 %1187
      %v1189 = vmin.f32 %v1154, %v1155
      %1190 = vmin.xlane.f32.xlu0 %v1189
      %v1191 = vpop.xlane.xlu0 %1190
      %v1192 = vmin.f32 %v1156, %v1157
      %1193 = vmin.xlane.f32.xlu0 %v1192
      %v1194 = vpop.xlane.xlu0 %1193
      %v1195 = vmin.f32 %v1158, %v1159
      %1196 = vmin.xlane.f32.xlu0 %v1195
      %v1197 = vpop.xlane.xlu0 %1196
      %v1198 = vmin.f32 %v1160, %v1161
      %1199 = vmin.xlane.f32.xlu0 %v1198
      %v1200 = vpop.xlane.xlu0 %1199
      %v1201 = vmin.f32 %v1162, %v1163
      %1202 = vmin.xlane.f32.xlu0 %v1201
      %v1203 = vpop.xlane.xlu0 %1202
      %v1204 = vmin.f32 %v1164, %v1165
      %1205 = vmin.xlane.f32.xlu0 %v1204
      %v1206 = vpop.xlane.xlu0 %1205
      %v1207 = vmin.f32 %v1166, %v1167
      %1208 = vmin.xlane.f32.xlu0 %v1207
      %v1209 = vpop.xlane.xlu0 %1208
      %v1210 = vmin.f32 %v1168, %v1169
      %1211 = vmin.xlane.f32.xlu0 %v1210
      %v1212 = vpop.xlane.xlu0 %1211
      %v1213 = vmin.f32 %v1170, %v1171
      %1214 = vmin.xlane.f32.xlu0 %v1213
      %v1215 = vpop.xlane.xlu0 %1214
      %v1216 = vmin.f32 %v1172, %v1173
      %1217 = vmin.xlane.f32.xlu0 %v1216
      %v1218 = vpop.xlane.xlu0 %1217
      %v1219 = vmin.f32 %v1174, %v1175
      %1220 = vmin.xlane.f32.xlu0 %v1219
      %v1221 = vpop.xlane.xlu0 %1220
      %v1222 = vmin.f32 %v1176, %v1177
      %1223 = vmin.xlane.f32.xlu0 %v1222
      %v1224 = vpop.xlane.xlu0 %1223
      %v1225 = vmin.f32 %v1178, %v1179
      %1226 = vmin.xlane.f32.xlu0 %v1225
      %v1227 = vpop.xlane.xlu0 %1226
      %vm1228 = vcmp.eq.f32.partialorder %v618, %v1182
      %vm1229 = vcmp.eq.f32.partialorder %v619, %v1182
      %vm1230 = vcmp.eq.f32.partialorder %v618, %v1185
      %vm1231 = vcmp.eq.f32.partialorder %v619, %v1185
      %vm1232 = vcmp.eq.f32.partialorder %v618, %v1188
      %vm1233 = vcmp.eq.f32.partialorder %v619, %v1188
      %vm1234 = vcmp.eq.f32.partialorder %v618, %v1191
      %vm1235 = vcmp.eq.f32.partialorder %v619, %v1191
      %vm1236 = vcmp.eq.f32.partialorder %v618, %v1194
      %vm1237 = vcmp.eq.f32.partialorder %v619, %v1194
      %vm1238 = vcmp.eq.f32.partialorder %v618, %v1197
      %vm1239 = vcmp.eq.f32.partialorder %v619, %v1197
      %vm1240 = vcmp.eq.f32.partialorder %v618, %v1200
      %vm1241 = vcmp.eq.f32.partialorder %v619, %v1200
      %vm1242 = vcmp.eq.f32.partialorder %v618, %v1203
      %vm1243 = vcmp.eq.f32.partialorder %v619, %v1203
      %vm1244 = vcmp.eq.f32.partialorder %v618, %v1206
      %vm1245 = vcmp.eq.f32.partialorder %v619, %v1206
      %vm1246 = vcmp.eq.f32.partialorder %v618, %v1209
      %vm1247 = vcmp.eq.f32.partialorder %v619, %v1209
      %vm1248 = vcmp.eq.f32.partialorder %v618, %v1212
      %vm1249 = vcmp.eq.f32.partialorder %v619, %v1212
      %vm1250 = vcmp.eq.f32.partialorder %v618, %v1215
      %vm1251 = vcmp.eq.f32.partialorder %v619, %v1215
      %vm1252 = vcmp.eq.f32.partialorder %v618, %v1218
      %vm1253 = vcmp.eq.f32.partialorder %v619, %v1218
      %vm1254 = vcmp.eq.f32.partialorder %v618, %v1221
      %vm1255 = vcmp.eq.f32.partialorder %v619, %v1221
      %vm1256 = vcmp.eq.f32.partialorder %v618, %v1224
      %vm1257 = vcmp.eq.f32.partialorder %v619, %v1224
      %vm1258 = vcmp.eq.f32.partialorder %v618, %v1227
      %vm1259 = vcmp.eq.f32.partialorder %v619, %v1227
      %v1260 = vsel %vm1228, inf, %v1036
      %v1261 = vsel %vm1229, inf, %v1037
      %v1262 = vsel %vm1230, inf, %v1038
      %v1263 = vsel %vm1231, inf, %v1039
      %v1264 = vsel %vm1232, inf, %v1040
      %v1265 = vsel %vm1233, inf, %v1041
      %v1266 = vsel %vm1234, inf, %v1042
      %v1267 = vsel %vm1235, inf, %v1043
      %v1268 = vsel %vm1236, inf, %v1044
      %v1269 = vsel %vm1237, inf, %v1045
      %v1270 = vsel %vm1238, inf, %v1046
      %v1271 = vsel %vm1239, inf, %v1047
      %v1272 = vsel %vm1240, inf, %v1048
      %v1273 = vsel %vm1241, inf, %v1049
      %v1274 = vsel %vm1242, inf, %v1050
      %v1275 = vsel %vm1243, inf, %v1051
      %v1276 = vsel %vm1244, inf, %v1052
      %v1277 = vsel %vm1245, inf, %v1053
      %v1278 = vsel %vm1246, inf, %v1054
      %v1279 = vsel %vm1247, inf, %v1055
      %v1280 = vsel %vm1248, inf, %v1056
      %v1281 = vsel %vm1249, inf, %v1057
      %v1282 = vsel %vm1250, inf, %v1058
      %v1283 = vsel %vm1251, inf, %v1059
      %v1284 = vsel %vm1252, inf, %v1060
      %v1285 = vsel %vm1253, inf, %v1061
      %v1286 = vsel %vm1254, inf, %v1062
      %v1287 = vsel %vm1255, inf, %v1063
      %v1288 = vsel %vm1256, inf, %v1064
      %v1289 = vsel %vm1257, inf, %v1065
      %v1290 = vsel %vm1258, inf, %v1066
      %v1291 = vsel %vm1259, inf, %v1067
      %v1292 = vmin.f32 %v1260, %v1261
      %1293 = vmin.xlane.f32.xlu0 %v1292
      %v1294 = vpop.xlane.xlu0 %1293
      %v1295 = vmin.f32 %v1262, %v1263
      %1296 = vmin.xlane.f32.xlu0 %v1295
      %v1297 = vpop.xlane.xlu0 %1296
      %v1298 = vmin.f32 %v1264, %v1265
      %1299 = vmin.xlane.f32.xlu0 %v1298
      %v1300 = vpop.xlane.xlu0 %1299
      %v1301 = vmin.f32 %v1266, %v1267
      %1302 = vmin.xlane.f32.xlu0 %v1301
      %v1303 = vpop.xlane.xlu0 %1302
      %v1304 = vmin.f32 %v1268, %v1269
      %1305 = vmin.xlane.f32.xlu0 %v1304
      %v1306 = vpop.xlane.xlu0 %1305
      %v1307 = vmin.f32 %v1270, %v1271
      %1308 = vmin.xlane.f32.xlu0 %v1307
      %v1309 = vpop.xlane.xlu0 %1308
      %v1310 = vmin.f32 %v1272, %v1273
      %1311 = vmin.xlane.f32.xlu0 %v1310
      %v1312 = vpop.xlane.xlu0 %1311
      %v1313 = vmin.f32 %v1274, %v1275
      %1314 = vmin.xlane.f32.xlu0 %v1313
      %v1315 = vpop.xlane.xlu0 %1314
      %v1316 = vmin.f32 %v1276, %v1277
      %1317 = vmin.xlane.f32.xlu0 %v1316
      %v1318 = vpop.xlane.xlu0 %1317
      %v1319 = vmin.f32 %v1278, %v1279
      %1320 = vmin.xlane.f32.xlu0 %v1319
      %v1321 = vpop.xlane.xlu0 %1320
      %v1322 = vmin.f32 %v1280, %v1281
      %1323 = vmin.xlane.f32.xlu0 %v1322
      %v1324 = vpop.xlane.xlu0 %1323
      %v1325 = vmin.f32 %v1282, %v1283
      %1326 = vmin.xlane.f32.xlu0 %v1325
      %v1327 = vpop.xlane.xlu0 %1326
      %v1328 = vmin.f32 %v1284, %v1285
      %1329 = vmin.xlane.f32.xlu0 %v1328
      %v1330 = vpop.xlane.xlu0 %1329
      %v1331 = vmin.f32 %v1286, %v1287
      %1332 = vmin.xlane.f32.xlu0 %v1331
      %v1333 = vpop.xlane.xlu0 %1332
      %v1334 = vmin.f32 %v1288, %v1289
      %1335 = vmin.xlane.f32.xlu0 %v1334
      %v1336 = vpop.xlane.xlu0 %1335
      %v1337 = vmin.f32 %v1290, %v1291
      %1338 = vmin.xlane.f32.xlu0 %v1337
      %v1339 = vpop.xlane.xlu0 %1338
      %vm1340 = vcmp.le.f32.partialorder %v1260, %v1294
      %vm1341 = vcmp.le.f32.partialorder %v1261, %v1294
      %vm1342 = vcmp.le.f32.partialorder %v1262, %v1297
      %vm1343 = vcmp.le.f32.partialorder %v1263, %v1297
      %vm1344 = vcmp.le.f32.partialorder %v1264, %v1300
      %vm1345 = vcmp.le.f32.partialorder %v1265, %v1300
      %vm1346 = vcmp.le.f32.partialorder %v1266, %v1303
      %vm1347 = vcmp.le.f32.partialorder %v1267, %v1303
      %vm1348 = vcmp.le.f32.partialorder %v1268, %v1306
      %vm1349 = vcmp.le.f32.partialorder %v1269, %v1306
      %vm1350 = vcmp.le.f32.partialorder %v1270, %v1309
      %vm1351 = vcmp.le.f32.partialorder %v1271, %v1309
      %vm1352 = vcmp.le.f32.partialorder %v1272, %v1312
      %vm1353 = vcmp.le.f32.partialorder %v1273, %v1312
      %vm1354 = vcmp.le.f32.partialorder %v1274, %v1315
      %vm1355 = vcmp.le.f32.partialorder %v1275, %v1315
      %vm1356 = vcmp.le.f32.partialorder %v1276, %v1318
      %vm1357 = vcmp.le.f32.partialorder %v1277, %v1318
      %vm1358 = vcmp.le.f32.partialorder %v1278, %v1321
      %vm1359 = vcmp.le.f32.partialorder %v1279, %v1321
      %vm1360 = vcmp.le.f32.partialorder %v1280, %v1324
      %vm1361 = vcmp.le.f32.partialorder %v1281, %v1324
      %vm1362 = vcmp.le.f32.partialorder %v1282, %v1327
      %vm1363 = vcmp.le.f32.partialorder %v1283, %v1327
      %vm1364 = vcmp.le.f32.partialorder %v1284, %v1330
      %vm1365 = vcmp.le.f32.partialorder %v1285, %v1330
      %vm1366 = vcmp.le.f32.partialorder %v1286, %v1333
      %vm1367 = vcmp.le.f32.partialorder %v1287, %v1333
      %vm1368 = vcmp.le.f32.partialorder %v1288, %v1336
      %vm1369 = vcmp.le.f32.partialorder %v1289, %v1336
      %vm1370 = vcmp.le.f32.partialorder %v1290, %v1339
      %vm1371 = vcmp.le.f32.partialorder %v1291, %v1339
      %v1372 = vsel %vm1340, %v618, 256.0
      %v1373 = vsel %vm1341, %v619, 256.0
      %v1374 = vsel %vm1342, %v618, 256.0
      %v1375 = vsel %vm1343, %v619, 256.0
      %v1376 = vsel %vm1344, %v618, 256.0
      %v1377 = vsel %vm1345, %v619, 256.0
      %v1378 = vsel %vm1346, %v618, 256.0
      %v1379 = vsel %vm1347, %v619, 256.0
      %v1380 = vsel %vm1348, %v618, 256.0
      %v1381 = vsel %vm1349, %v619, 256.0
      %v1382 = vsel %vm1350, %v618, 256.0
      %v1383 = vsel %vm1351, %v619, 256.0
      %v1384 = vsel %vm1352, %v618, 256.0
      %v1385 = vsel %vm1353, %v619, 256.0
      %v1386 = vsel %vm1354, %v618, 256.0
      %v1387 = vsel %vm1355, %v619, 256.0
      %v1388 = vsel %vm1356, %v618, 256.0
      %v1389 = vsel %vm1357, %v619, 256.0
      %v1390 = vsel %vm1358, %v618, 256.0
      %v1391 = vsel %vm1359, %v619, 256.0
      %v1392 = vsel %vm1360, %v618, 256.0
      %v1393 = vsel %vm1361, %v619, 256.0
      %v1394 = vsel %vm1362, %v618, 256.0
      %v1395 = vsel %vm1363, %v619, 256.0
      %v1396 = vsel %vm1364, %v618, 256.0
      %v1397 = vsel %vm1365, %v619, 256.0
      %v1398 = vsel %vm1366, %v618, 256.0
      %v1399 = vsel %vm1367, %v619, 256.0
      %v1400 = vsel %vm1368, %v618, 256.0
      %v1401 = vsel %vm1369, %v619, 256.0
      %v1402 = vsel %vm1370, %v618, 256.0
      %v1403 = vsel %vm1371, %v619, 256.0
      %v1404 = vmin.f32 %v1372, %v1373
      %1405 = vmin.xlane.f32.xlu0 %v1404
      %v1406 = vpop.xlane.xlu0 %1405
      %v1407 = vmin.f32 %v1374, %v1375
      %1408 = vmin.xlane.f32.xlu0 %v1407
      %v1409 = vpop.xlane.xlu0 %1408
      %v1410 = vmin.f32 %v1376, %v1377
      %1411 = vmin.xlane.f32.xlu0 %v1410
      %v1412 = vpop.xlane.xlu0 %1411
      %v1413 = vmin.f32 %v1378, %v1379
      %1414 = vmin.xlane.f32.xlu0 %v1413
      %v1415 = vpop.xlane.xlu0 %1414
      %v1416 = vmin.f32 %v1380, %v1381
      %1417 = vmin.xlane.f32.xlu0 %v1416
      %v1418 = vpop.xlane.xlu0 %1417
      %v1419 = vmin.f32 %v1382, %v1383
      %1420 = vmin.xlane.f32.xlu0 %v1419
      %v1421 = vpop.xlane.xlu0 %1420
      %v1422 = vmin.f32 %v1384, %v1385
      %1423 = vmin.xlane.f32.xlu0 %v1422
      %v1424 = vpop.xlane.xlu0 %1423
      %v1425 = vmin.f32 %v1386, %v1387
      %1426 = vmin.xlane.f32.xlu0 %v1425
      %v1427 = vpop.xlane.xlu0 %1426
      %v1428 = vmin.f32 %v1388, %v1389
      %1429 = vmin.xlane.f32.xlu0 %v1428
      %v1430 = vpop.xlane.xlu0 %1429
      %v1431 = vmin.f32 %v1390, %v1391
      %1432 = vmin.xlane.f32.xlu0 %v1431
      %v1433 = vpop.xlane.xlu0 %1432
      %v1434 = vmin.f32 %v1392, %v1393
      %1435 = vmin.xlane.f32.xlu0 %v1434
      %v1436 = vpop.xlane.xlu0 %1435
      %v1437 = vmin.f32 %v1394, %v1395
      %1438 = vmin.xlane.f32.xlu0 %v1437
      %v1439 = vpop.xlane.xlu0 %1438
      %v1440 = vmin.f32 %v1396, %v1397
      %1441 = vmin.xlane.f32.xlu0 %v1440
      %v1442 = vpop.xlane.xlu0 %1441
      %v1443 = vmin.f32 %v1398, %v1399
      %1444 = vmin.xlane.f32.xlu0 %v1443
      %v1445 = vpop.xlane.xlu0 %1444
      %v1446 = vmin.f32 %v1400, %v1401
      %1447 = vmin.xlane.f32.xlu0 %v1446
      %v1448 = vpop.xlane.xlu0 %1447
      %v1449 = vmin.f32 %v1402, %v1403
      %1450 = vmin.xlane.f32.xlu0 %v1449
      %v1451 = vpop.xlane.xlu0 %1450
      %vm1452 = vcmask 7168
      %v1453 = vsel %vm1452, %v734, %v958
      %v1454 = vsel %vm1452, %v737, %v961
      %v1455 = vsel %vm1452, %v740, %v964
      %v1456 = vsel %vm1452, %v743, %v967
      %v1457 = vsel %vm1452, %v746, %v970
      %v1458 = vsel %vm1452, %v749, %v973
      %v1459 = vsel %vm1452, %v752, %v976
      %v1460 = vsel %vm1452, %v755, %v979
      %v1461 = vsel %vm1452, %v758, %v982
      %v1462 = vsel %vm1452, %v761, %v985
      %v1463 = vsel %vm1452, %v764, %v988
      %v1464 = vsel %vm1452, %v767, %v991
      %v1465 = vsel %vm1452, %v770, %v994
      %v1466 = vsel %vm1452, %v773, %v997
      %v1467 = vsel %vm1452, %v776, %v1000
      %v1468 = vsel %vm1452, %v779, %v1003
      %vm1469 = vcmask 15360
      %v1470 = vsel %vm1469, %v1453, %v1182
      %v1471 = vsel %vm1469, %v1454, %v1185
      %v1472 = vsel %vm1469, %v1455, %v1188
      %v1473 = vsel %vm1469, %v1456, %v1191
      %v1474 = vsel %vm1469, %v1457, %v1194
      %v1475 = vsel %vm1469, %v1458, %v1197
      %v1476 = vsel %vm1469, %v1459, %v1200
      %v1477 = vsel %vm1469, %v1460, %v1203
      %v1478 = vsel %vm1469, %v1461, %v1206
      %v1479 = vsel %vm1469, %v1462, %v1209
      %v1480 = vsel %vm1469, %v1463, %v1212
      %v1481 = vsel %vm1469, %v1464, %v1215
      %v1482 = vsel %vm1469, %v1465, %v1218
      %v1483 = vsel %vm1469, %v1466, %v1221
      %v1484 = vsel %vm1469, %v1467, %v1224
      %v1485 = vsel %vm1469, %v1468, %v1227
      %v1486 = vsel %vm222, %v1470, %v1406
      %v1487 = vsel %vm222, %v1471, %v1409
      %v1488 = vsel %vm222, %v1472, %v1412
      %v1489 = vsel %vm222, %v1473, %v1415
      %v1490 = vsel %vm222, %v1474, %v1418
      %v1491 = vsel %vm222, %v1475, %v1421
      %v1492 = vsel %vm222, %v1476, %v1424
      %v1493 = vsel %vm222, %v1477, %v1427
      %v1494 = vsel %vm222, %v1478, %v1430
      %v1495 = vsel %vm222, %v1479, %v1433
      %v1496 = vsel %vm222, %v1480, %v1436
      %v1497 = vsel %vm222, %v1481, %v1439
      %v1498 = vsel %vm222, %v1482, %v1442
      %v1499 = vsel %vm222, %v1483, %v1445
      %v1500 = vsel %vm222, %v1484, %v1448
      %v1501 = vsel %vm222, %v1485, %v1451
      %v1502 = vcvt.f32.s32.to.zero.pseudo %v1486
      %v1503 = vcvt.f32.s32.to.zero.pseudo %v1487
      %v1504 = vcvt.f32.s32.to.zero.pseudo %v1488
      %v1505 = vcvt.f32.s32.to.zero.pseudo %v1489
      %v1506 = vcvt.f32.s32.to.zero.pseudo %v1490
      %v1507 = vcvt.f32.s32.to.zero.pseudo %v1491
      %v1508 = vcvt.f32.s32.to.zero.pseudo %v1492
      %v1509 = vcvt.f32.s32.to.zero.pseudo %v1493
      %v1510 = vcvt.f32.s32.to.zero.pseudo %v1494
      %v1511 = vcvt.f32.s32.to.zero.pseudo %v1495
      %v1512 = vcvt.f32.s32.to.zero.pseudo %v1496
      %v1513 = vcvt.f32.s32.to.zero.pseudo %v1497
      %v1514 = vcvt.f32.s32.to.zero.pseudo %v1498
      %v1515 = vcvt.f32.s32.to.zero.pseudo %v1499
      %v1516 = vcvt.f32.s32.to.zero.pseudo %v1500
      %v1517 = vcvt.f32.s32.to.zero.pseudo %v1501
      %vm1518 = vcmask 31744
      %1519 = vst.msk [vmem:[%s201] sm:$0xff] %vm1518, %v1502
      %1520 = vst.msk [vmem:[%s201 + $0x8] sm:$0xff] %vm1518, %v1503
      %1521 = vst.msk [vmem:[%s201 + $0x10] sm:$0xff] %vm1518, %v1504
      %1522 = vst.msk [vmem:[%s201 + $0x18] sm:$0xff] %vm1518, %v1505
      %1523 = vst.msk [vmem:[%s201 + $0x20] sm:$0xff] %vm1518, %v1506
      %1524 = vst.msk [vmem:[%s201 + $0x28] sm:$0xff] %vm1518, %v1507
      %1525 = vst.msk [vmem:[%s201 + $0x30] sm:$0xff] %vm1518, %v1508
      %1526 = vst.msk [vmem:[%s201 + $0x38] sm:$0xff] %vm1518, %v1509
      %1527 = vst.msk [vmem:[%s201 + $0x40] sm:$0xff] %vm1518, %v1510
      %1528 = vst.msk [vmem:[%s201 + $0x48] sm:$0xff] %vm1518, %v1511
      %1529 = vst.msk [vmem:[%s201 + $0x50] sm:$0xff] %vm1518, %v1512
      %1530 = vst.msk [vmem:[%s201 + $0x58] sm:$0xff] %vm1518, %v1513
      %1531 = vst.msk [vmem:[%s201 + $0x60] sm:$0xff] %vm1518, %v1514
      %1532 = vst.msk [vmem:[%s201 + $0x68] sm:$0xff] %vm1518, %v1515
      %1533 = vst.msk [vmem:[%s201 + $0x70] sm:$0xff] %vm1518, %v1516
      %1534 = vst.msk [vmem:[%s201 + $0x78] sm:$0xff] %vm1518, %v1517
      %s1535 = smul.u32 16, %s18
      %p1536 = scmp.lt.s32.totalorder %s17, 1
      %s1537 = scalar_select %p1536, %s17, 1
      %p1538 = scmp.lt.s32.totalorder %s1535, 31
      %s1539 = scalar_select %p1538, %s1535, 31
      %s1540 = smul.addr %s1537, 32
      %s1541 = sadd.s32 %s1539, %s1540
      %s1542 = smul.addr %s1541, 8
      %s1543 = scalar_lea.vmem %s2, %s1542
      // Predicated region
      $region29: #{tpu_custom_call.1} parent=27 // pred_check
        %p1544 = pneg %p99
      $region30: #{tpu_custom_call.1} parent=27 // pred_check_branch
        %1546 = sbr.rel (%p1544) target = $region32
      $region31: #{tpu_custom_call.1} parent=27 // pred_region
        %s1547 = smul.u32 16, %s18
      $region32: #{tpu_custom_call.1} parent=27 // pred_fallthru
        _
    $region28: #{tpu_custom_call.1} parent=5 // pred_fallthru
      _
    %p1548 = scmp.le.s32.totalorder 2, %s8
    // Predicated region
    $region33: #{tpu_custom_call.1} parent=5 // pred_check
      %p1549 = pneg %p1548
    $region34: #{tpu_custom_call.1} parent=5 // pred_check_branch
      %1551 = sbr.rel (%p1549) target = $region36
    $region35: #{tpu_custom_call.1} parent=5 // pred_region
      %s1552 = ssub.s32 %s8, 2
      // Predicated region
      $region37: #{tpu_custom_call.1} parent=35 // pred_check
        %p1553 = pneg %p105
      $region38: #{tpu_custom_call.1} parent=35 // pred_check_branch
        %1555 = sbr.rel (%p1553) target = $region40
      $region39: #{tpu_custom_call.1} parent=35 // pred_region
        %s1556 = smul.u32 16, %s20
        %p1557 = scmp.lt.s32.totalorder %s19, 1
        %s1558 = scalar_select %p1557, %s19, 1
        %p1559 = scmp.lt.s32.totalorder %s1556, 31
        %s1560 = scalar_select %p1559, %s1556, 31
        %s1561 = smul.addr %s1558, 32
        %s1562 = sadd.s32 %s1560, %s1561
        %s1563 = smul.addr %s1562, 8
        %s1564 = scalar_lea.vmem %s2, %s1563
      $region40: #{tpu_custom_call.1} parent=35 // pred_fallthru
        _
    $region36: #{tpu_custom_call.1} parent=5 // pred_fallthru
      _
  $region6: #{tpu_custom_call.1} parent=0 // loop_footer
    %s12 = sadd.s32 1, %s8
  $region7: #{tpu_custom_call.1} parent=0 // loop_footer_branch
    %7 = sbr.rel target = $region3
  $region8: #{tpu_custom_call.1} parent=0 // loop_exit
    _

</llo_original>
